<compile_context>
chip_gen: v7x
topology: tpu7x:2x2x1
jax: 0.10.0
libtpu: 0.0.40
codegen_flags: <defaults>
</compile_context>

<pallas_src>
import functools

import jax
import jax.numpy as jnp
from jax.experimental import pallas as pl
from jax.experimental.pallas import tpu as pltpu


_VMEM_LIMIT = 32 * 1024 * 1024   # conservative: safe on v5e/v6e (128 MiB) and v7x (64 MiB/TC)


def _round_up(x, m):
    return ((x + m - 1) // m) * m


def _choose_tile(p, max_t):
    """Largest 128-multiple divisor of p (p is a multiple of 128) that is <= max_t."""
    best = 128
    t = 128
    while t <= min(p, max_t):
        if p % t == 0:
            best = t
        t += 128
    return best


# ----------------------------------------------------------------------------------
# Pallas kernel: tiled matmul + bias (+residual) (+ReLU) epilogue
# ----------------------------------------------------------------------------------

def _matmul_bias_kernel(x_ref, w_ref, b_ref, *rest, relu, has_residual):
    """bf16 MXU matmul with f32 VMEM accumulator; epilogue on the last K step."""
    if has_residual:
        r_ref, o_ref, acc_ref = rest
    else:
        o_ref, acc_ref = rest

    k = pl.program_id(2)

    @pl.when(k == 0)
    def _():
        acc_ref[...] = jnp.zeros_like(acc_ref)

    acc_ref[...] += jnp.dot(x_ref[...], w_ref[...],
                            preferred_element_type=jnp.float32)

    @pl.when(k == pl.num_programs(2) - 1)
    def _():
        out = acc_ref[...] + b_ref[...]
        if has_residual:
            out = out + r_ref[...].astype(jnp.float32)
        if relu:
            out = jnp.maximum(out, 0.0)
        o_ref[...] = out.astype(o_ref.dtype)


def matmul_bias_act(x, wp, bp, *, relu, residual=None, out_dtype=jnp.bfloat16):
    """x:(M,K) @ wp:(Kp,Np) + bp [+residual][ReLU].

    wp/bp are pre-padded (128 multiples) and pre-cast (bf16/f32) at init time.
    Returns the PADDED (Mp, Np) result; the caller slices [:M, :N]."""
    M, K = x.shape
    Kp, Np = wp.shape

    tm = min(256, _round_up(M, 16))        # bf16 sublane packing -> multiple of 16
    Mp = _round_up(M, tm)
    tk = _choose_tile(Kp, 2048)
    tn = _choose_tile(Np, 512)
    # Keep >= 2 parallel grid steps where possible so both v7x TensorCores get work.
    if (Mp // tm) * (Np // tn) < 2:
        if Np >= 256:
            tn = _choose_tile(Np, Np // 2)
        elif tm >= 32 and (tm // 2) % 16 == 0:
            tm = tm // 2

    xp = x.astype(jnp.bfloat16)
    if (Mp, Kp) != (M, K):
        xp = jnp.pad(xp, ((0, Mp - M), (0, Kp - K)))

    in_specs = [
        pl.BlockSpec((tm, tk), lambda i, j, k: (i, k)),
        pl.BlockSpec((tk, tn), lambda i, j, k: (k, j)),
        pl.BlockSpec((1, tn), lambda i, j, k: (0, j)),
    ]
    args = [xp, wp, bp]
    has_residual = residual is not None
    if has_residual:
        rp = residual.astype(jnp.bfloat16)
        if rp.shape != (Mp, Np):
            rp = jnp.pad(rp, ((0, Mp - rp.shape[0]), (0, Np - rp.shape[1])))
        in_specs.append(pl.BlockSpec((tm, tn), lambda i, j, k: (i, j)))
        args.append(rp)

    return pl.pallas_call(
        functools.partial(_matmul_bias_kernel, relu=relu, has_residual=has_residual),
        out_shape=jax.ShapeDtypeStruct((Mp, Np), out_dtype),
        grid=(Mp // tm, Np // tn, Kp // tk),
        in_specs=in_specs,
        out_specs=pl.BlockSpec((tm, tn), lambda i, j, k: (i, j)),
        scratch_shapes=[pltpu.VMEM((tm, tn), jnp.float32)],
        compiler_params=pltpu.CompilerParams(
            dimension_semantics=("parallel", "parallel", "arbitrary"),
            vmem_limit_bytes=_VMEM_LIMIT),
    )(*args)


# ----------------------------------------------------------------------------------
# Plain-JAX glue (bf16, fused by XLA inside the per-block jits)
# ----------------------------------------------------------------------------------

def _im2col(x, kh, kw, stride, padding):
    B, H, W, C = x.shape
    OH = (H + 2 * padding - kh) // stride + 1
    OW = (W + 2 * padding - kw) // stride + 1
    xp = jnp.pad(x, ((0, 0), (padding, padding), (padding, padding), (0, 0)))
    cols = []
    for ki in range(kh):
        for kj in range(kw):
            cols.append(xp[:, ki:ki + OH * stride:stride, kj:kj + OW * stride:stride, :])
    # patch channel order (ki, kj, c) matches w.reshape(KH*KW*Cin, Cout)
    return jnp.concatenate(cols, axis=-1), OH, OW


def conv2d_bn_act(x, wp, bp, *, meta, stride=1, padding=0, relu=True,
                  residual=None, out_dtype=jnp.bfloat16):
    """Conv2d(bias=False) + folded eval-mode BN (+residual add)(+ReLU).

    Weights are pre-folded / pre-padded / bf16 (prepare_params); meta = (kh,kw,cin,cout)."""
    kh, kw, cin, cout = meta
    B, H, W, _ = x.shape
    if kh == 1 and kw == 1 and padding == 0:
        OH = (H - 1) // stride + 1
        OW = (W - 1) // stride + 1
        patches = x[:, ::stride, ::stride, :].reshape(B * OH * OW, cin)
    else:
        patches, OH, OW = _im2col(x, kh, kw, stride, padding)
        patches = patches.reshape(B * OH * OW, kh * kw * cin)
    res = residual.reshape(B * OH * OW, cout) if residual is not None else None
    out = matmul_bias_act(patches, wp, bp, relu=relu, residual=res, out_dtype=out_dtype)
    return out[:B * OH * OW, :cout].reshape(B, OH, OW, cout)


def max_pool2d(x, k=3, stride=2, padding=1):
    # chain of maximums over shifted slices (no (M, k*k, C) materialization)
    B, H, W, C = x.shape
    OH = (H + 2 * padding - k) // stride + 1
    OW = (W + 2 * padding - k) // stride + 1
    xp = jnp.pad(x, ((0, 0), (padding, padding), (padding, padding), (0, 0)),
                 constant_values=-jnp.inf)
    out = None
    for ki in range(k):
        for kj in range(k):
            win = xp[:, ki:ki + OH * stride:stride, kj:kj + OW * stride:stride, :]
            out = win if out is None else jnp.maximum(out, win)
    return out


def avg_pool2x2(x):
    """AvgPool2d(2, 2, ceil_mode=True, count_include_pad=False) (ResNet-D shortcut)."""
    B, H, W, C = x.shape
    OH, OW = -(-H // 2), -(-W // 2)
    xs = jnp.pad(x.astype(jnp.float32),
                 ((0, 0), (0, OH * 2 - H), (0, OW * 2 - W), (0, 0)))
    s = xs.reshape(B, OH, 2, OW, 2, C).sum(axis=(2, 4))
    ch = jnp.minimum(jnp.arange(OH) * 2 + 2, H) - jnp.arange(OH) * 2
    cw = jnp.minimum(jnp.arange(OW) * 2 + 2, W) - jnp.arange(OW) * 2
    denom = (ch[:, None] * cw[None, :]).astype(jnp.float32)
    return (s / denom[None, :, :, None]).astype(x.dtype)


# ----------------------------------------------------------------------------------
# Deterministic synthetic parameters (resnet200d: deep stem, Bottleneck [3,24,36,3],
# avg_down=True; conv1[0] replaced with Conv2d(4, 32, 3, 2, 1, bias=False))
# ----------------------------------------------------------------------------------

class _ParamGen:
    def __init__(self, seed=0):
        self._key = jax.random.PRNGKey(seed)
        self._i = 0

    def _next(self):
        self._i += 1
        return jax.random.fold_in(self._key, self._i)

    def conv(self, kh, kw, cin, cout):
        std = (2.0 / (kh * kw * cin)) ** 0.5
        return std * jax.random.normal(self._next(), (kh, kw, cin, cout), jnp.float32)

    def bn(self, c):
        scale = 1.0 + 0.1 * jax.random.normal(self._next(), (c,), jnp.float32)
        bias = 0.1 * jax.random.normal(self._next(), (c,), jnp.float32)
        return scale, bias

    def linear(self, cin, cout):
        std = 1.0 / (cin ** 0.5)
        w = std * jax.random.normal(self._next(), (cin, cout), jnp.float32)
        b = 0.1 * jax.random.normal(self._next(), (cout,), jnp.float32)
        return w, b


def init_jakiro_resnet200d_params(seed=0, in_chans=4, out_features=19):
    g = _ParamGen(seed)
    params = {}
    params["stem"] = [  # deep stem: 3x (conv3x3 + BN + ReLU)
        (g.conv(3, 3, in_chans, 32),) + g.bn(32),
        (g.conv(3, 3, 32, 32),) + g.bn(32),
        (g.conv(3, 3, 32, 64),) + g.bn(64),
    ]
    layers_cfg = [(64, 3), (128, 24), (256, 36), (512, 3)]  # resnet200
    inplanes = 64
    layers = []
    for li, (planes, nblocks) in enumerate(layers_cfg):
        stride = 1 if li == 0 else 2
        blocks = []
        for bi in range(nblocks):
            s = stride if bi == 0 else 1
            outplanes = planes * 4
            blk = {
                "conv1": (g.conv(1, 1, inplanes, planes),) + g.bn(planes),
                "conv2": (g.conv(3, 3, planes, planes),) + g.bn(planes),
                "conv3": (g.conv(1, 1, planes, outplanes),) + g.bn(outplanes),
                "downsample": None,
            }
            if s != 1 or inplanes != outplanes:
                blk["downsample"] = (g.conv(1, 1, inplanes, outplanes),) + g.bn(outplanes)
            blocks.append(blk)
            inplanes = outplanes
        layers.append(blocks)
    params["layers"] = layers
    params["last_linear"] = g.linear(512 * 4, out_features)
    params["last_linear2"] = g.linear(512 * 4, out_features)
    return params


# ----------------------------------------------------------------------------------
# One-time parameter preparation: fold BN scale into weights, reshape to (K,N),
# pad to 128-multiples, cast to bf16 (no per-forward pad/cast/fold work)
# ----------------------------------------------------------------------------------

def _prep_conv_bn(w, scale, bias):
    kh, kw, cin, cout = w.shape
    K = kh * kw * cin
    Kp, Np = _round_up(K, 128), _round_up(cout, 128)
    wm = (w.reshape(K, cout) * scale[None, :]).astype(jnp.bfloat16)
    wm = jnp.pad(wm, ((0, Kp - K), (0, Np - cout)))
    bp = jnp.pad(bias, (0, Np - cout)).reshape(1, Np).astype(jnp.float32)
    return {"w": wm, "b": bp, "meta": (kh, kw, cin, cout)}


def prepare_params(raw):
    prep = {"stem": [_prep_conv_bn(w, s, b) for (w, s, b) in raw["stem"]]}
    layers = []
    for blocks in raw["layers"]:
        pblocks = []
        for blk in blocks:
            pblocks.append({
                "conv1": _prep_conv_bn(*blk["conv1"]),
                "conv2": _prep_conv_bn(*blk["conv2"]),
                "conv3": _prep_conv_bn(*blk["conv3"]),
                "downsample": (_prep_conv_bn(*blk["downsample"])
                               if blk["downsample"] is not None else None),
            })
        layers.append(pblocks)
    prep["layers"] = layers
    # Merged dual head: stack w1|w2 along N so both linears run in ONE Pallas call.
    (w1, b1), (w2, b2) = raw["last_linear"], raw["last_linear2"]
    nfeat, nout = w1.shape
    wh = jnp.concatenate([w1, w2], axis=1)          # (F, 2*nout)
    bh = jnp.concatenate([b1, b2])
    Kp, Np = _round_up(nfeat, 128), _round_up(2 * nout, 128)
    prep["head"] = {
        "w": jnp.pad(wh.astype(jnp.bfloat16), ((0, Kp - nfeat), (0, Np - 2 * nout))),
        "b": jnp.pad(bh, (0, Np - 2 * nout)).reshape(1, Np).astype(jnp.float32),
        "nout": nout,
    }
    return prep


# ----------------------------------------------------------------------------------
# Forward pass (jit'ed at stem / block / head granularity; identical blocks within a
# stage share one compiled executable via the jit cache)
# ----------------------------------------------------------------------------------

@functools.partial(jax.jit, static_argnames=("metas",))
def _stem_forward(x, w1, b1, w2, b2, w3, b3, *, metas):
    x = conv2d_bn_act(x, w1, b1, meta=metas[0], stride=2, padding=1, relu=True)
    x = conv2d_bn_act(x, w2, b2, meta=metas[1], stride=1, padding=1, relu=True)
    x = conv2d_bn_act(x, w3, b3, meta=metas[2], stride=1, padding=1, relu=True)
    return max_pool2d(x, k=3, stride=2, padding=1)


@functools.partial(jax.jit, static_argnames=("meta", "stride"))
def _bottleneck_block(x, w1, b1, w2, b2, w3, b3, dw, db, *, meta, stride):
    m1, m2, m3, mds = meta
    shortcut = x
    if mds is not None:
        s = avg_pool2x2(x) if stride != 1 else x
        shortcut = conv2d_bn_act(s, dw, db, meta=mds, stride=1, padding=0, relu=False)
    out = conv2d_bn_act(x, w1, b1, meta=m1, stride=1, padding=0, relu=True)
    out = conv2d_bn_act(out, w2, b2, meta=m2, stride=stride, padding=1, relu=True)
    out = conv2d_bn_act(out, w3, b3, meta=m3, stride=1, padding=0, relu=True,
                        residual=shortcut)
    return out


@functools.partial(jax.jit, static_argnames=("cnt", "nout"))
def _head_forward(x, wh, bh, *, cnt, nout):
    B, H, W, C = x.shape
    # Flatten(AdaptiveAvgPool2d(1)) + cnt-max: tiny -> plain jnp (no pallas launch cost)
    pooled = x.astype(jnp.float32).mean(axis=(1, 2))             # (B, C)
    viewed = pooled.reshape(B // cnt, cnt, C).max(axis=1)        # (B//cnt, C)
    # TODO(synk): nn.Dropout(0.5) applied as identity (eval-mode semantics).
    stacked = jnp.concatenate([pooled, viewed], axis=0)          # (B + B//cnt, C)
    y = matmul_bias_act(stacked, wh, bh, relu=False, out_dtype=jnp.float32)
    return y[:B, :nout], y[B:B + B // cnt, nout:2 * nout]


def _run_block(x, blk, stride):
    has_ds = blk["downsample"] is not None
    meta = (blk["conv1"]["meta"], blk["conv2"]["meta"], blk["conv3"]["meta"],
            blk["downsample"]["meta"] if has_ds else None)
    dw = blk["downsample"]["w"] if has_ds else None
    db = blk["downsample"]["b"] if has_ds else None
    return _bottleneck_block(x,
                             blk["conv1"]["w"], blk["conv1"]["b"],
                             blk["conv2"]["w"], blk["conv2"]["b"],
                             blk["conv3"]["w"], blk["conv3"]["b"],
                             dw, db, meta=meta, stride=stride)


def jakiro_resnet200d_forward(prep, x_nchw, cnt):
    """x_nchw: (B, 4, H, W) float32, B divisible by cnt. Returns ((B,19), (B//cnt,19))."""
    x = jnp.transpose(x_nchw, (0, 2, 3, 1)).astype(jnp.bfloat16)   # NCHW -> NHWC, bf16
    stem = prep["stem"]
    x = _stem_forward(x, stem[0]["w"], stem[0]["b"], stem[1]["w"], stem[1]["b"],
                      stem[2]["w"], stem[2]["b"],
                      metas=(stem[0]["meta"], stem[1]["meta"], stem[2]["meta"]))
    for li, blocks in enumerate(prep["layers"]):
        stage_stride = 1 if li == 0 else 2
        for bi, blk in enumerate(blocks):
            x = _run_block(x, blk, stage_stride if bi == 0 else 1)
    head = prep["head"]
    return _head_forward(x, head["w"], head["b"], cnt=cnt, nout=head["nout"])


# ----------------------------------------------------------------------------------

if __name__ == "__main__":
    B, C, H, W, cnt = 4, 4, 32, 32, 2
    key = jax.random.PRNGKey(0)
    x = jax.random.normal(key, (B, C, H, W), jnp.float32)

    raw = init_jakiro_resnet200d_params(seed=0, in_chans=C, out_features=19)
    params = prepare_params(raw)

    out1, out2 = jakiro_resnet200d_forward(params, x, cnt)
    jax.block_until_ready((out1, out2))

    assert out1.shape == (B, 19) and out1.dtype == jnp.float32
    assert out2.shape == (B // cnt, 19) and out2.dtype == jnp.float32
    assert bool(jnp.all(jnp.isfinite(out1))) and bool(jnp.all(jnp.isfinite(out2)))
    print("KERNEL_OK")
</pallas_src>

<mosaic_0001>
module attributes {stable_mosaic.version = 11 : i64} {
  func.func @_matmul_bias_kernel(%arg0: i32, %arg1: i32, %arg2: i32, %arg3: memref<256x128xbf16, #tpu.memory_space<vmem>>, %arg4: memref<128x128xbf16, #tpu.memory_space<vmem>>, %arg5: memref<1x128xf32, #tpu.memory_space<vmem>>, %arg6: memref<256x128xbf16, #tpu.memory_space<vmem>>, %arg7: memref<256x128xf32, #tpu.memory_space<vmem>>) attributes {dimension_semantics = [#tpu.dimension_semantics<parallel>, #tpu.dimension_semantics<parallel>, #tpu.dimension_semantics<arbitrary>], iteration_bounds = array<i64: 4, 1, 1>, scalar_prefetch = 0 : i64, scratch_operands = 1 : i64, tpu.core_type = #tpu.core_type<tc>, window_params = [{transform_indices = @transform_0, window_bounds = array<i64: 256, 128>}, {transform_indices = @transform_1, window_bounds = array<i64: 128, 128>}, {transform_indices = @transform_2, window_bounds = array<i64: 1, 128>}, {transform_indices = @transform_3, window_bounds = array<i64: 256, 128>}]} {
    %c0_i32 = arith.constant 0 : i32
    %0 = arith.cmpi eq, %arg2, %c0_i32 : i32
    %1 = arith.extui %0 : i1 to i32
    %c0_i32_0 = arith.constant 0 : i32
    %2 = arith.cmpi ne, %1, %c0_i32_0 : i32
    scf.if %2 {
      %cst_10 = arith.constant 0.000000e+00 : f32
      %12 = vector.broadcast %cst_10 : f32 to vector<256x128xf32>
      %c0_11 = arith.constant 0 : index
      %c0_12 = arith.constant 0 : index
      %13 = vector.load %arg7[%c0_11, %c0_12] : memref<256x128xf32, #tpu.memory_space<vmem>>, vector<256x128xf32>
      tpu.vector_store %arg7[%c0_11, %c0_12], %12 {strides = array<i32>} : memref<256x128xf32, #tpu.memory_space<vmem>>, vector<256x128xf32>,
    } else {
    }
    %c0 = arith.constant 0 : index
    %c0_1 = arith.constant 0 : index
    %3 = vector.load %arg7[%c0, %c0_1] : memref<256x128xf32, #tpu.memory_space<vmem>>, vector<256x128xf32>
    %c0_2 = arith.constant 0 : index
    %c0_3 = arith.constant 0 : index
    %4 = vector.load %arg3[%c0_2, %c0_3] : memref<256x128xbf16, #tpu.memory_space<vmem>>, vector<256x128xbf16>
    %c0_4 = arith.constant 0 : index
    %c0_5 = arith.constant 0 : index
    %5 = vector.load %arg4[%c0_4, %c0_5] : memref<128x128xbf16, #tpu.memory_space<vmem>>, vector<128x128xbf16>
    %cst = arith.constant dense<0.000000e+00> : vector<256x128xf32>
    %6 = tpu.matmul %4, %5, %cst {dimension_numbers = #tpu.dot_dimension_numbers<[1], [0], [0], [1], [0, 0, 1, 1], [], []>} : vector<256x128xbf16>, vector<128x128xbf16>, vector<256x128xf32> -> vector<256x128xf32>
    %7 = arith.addf %3, %6 : vector<256x128xf32>
    %c0_6 = arith.constant 0 : index
    %c0_7 = arith.constant 0 : index
    %8 = vector.load %arg7[%c0_6, %c0_7] : memref<256x128xf32, #tpu.memory_space<vmem>>, vector<256x128xf32>
    tpu.vector_store %arg7[%c0_6, %c0_7], %7 {strides = array<i32>} : memref<256x128xf32, #tpu.memory_space<vmem>>, vector<256x128xf32>,
    %c0_i32_8 = arith.constant 0 : i32
    %9 = arith.cmpi eq, %arg2, %c0_i32_8 : i32
    %10 = arith.extui %9 : i1 to i32
    %c0_i32_9 = arith.constant 0 : i32
    %11 = arith.cmpi ne, %10, %c0_i32_9 : i32
    scf.if %11 {
      %c0_10 = arith.constant 0 : index
      %c0_11 = arith.constant 0 : index
      %12 = vector.load %arg7[%c0_10, %c0_11] : memref<256x128xf32, #tpu.memory_space<vmem>>, vector<256x128xf32>
      %c0_12 = arith.constant 0 : index
      %c0_13 = arith.constant 0 : index
      %13 = vector.load %arg5[%c0_12, %c0_13] : memref<1x128xf32, #tpu.memory_space<vmem>>, vector<1x128xf32>
      %14 = vector.broadcast %13 : vector<1x128xf32> to vector<256x128xf32>
      %15 = arith.addf %12, %14 : vector<256x128xf32>
      %cst_14 = arith.constant 0.000000e+00 : f32
      %16 = vector.broadcast %cst_14 : f32 to vector<256x128xf32>
      %17 = arith.maximumf %15, %16 : vector<256x128xf32>
      %18 = arith.truncf %17 : vector<256x128xf32> to vector<256x128xbf16>
      %c0_15 = arith.constant 0 : index
      %c0_16 = arith.constant 0 : index
      %19 = vector.load %arg6[%c0_15, %c0_16] : memref<256x128xbf16, #tpu.memory_space<vmem>>, vector<256x128xbf16>
      tpu.vector_store %arg6[%c0_15, %c0_16], %18 {strides = array<i32>} : memref<256x128xbf16, #tpu.memory_space<vmem>>, vector<256x128xbf16>,
    } else {
    }
    return
  }
  func.func @transform_0(%arg0: i32, %arg1: i32, %arg2: i32) -> (i32, i32) {
    %c0_i32 = arith.constant 0 : i32
    return %arg0, %arg2 : i32, i32
  }
  func.func @transform_1(%arg0: i32, %arg1: i32, %arg2: i32) -> (i32, i32) {
    %c0_i32 = arith.constant 0 : i32
    return %arg2, %arg1 : i32, i32
  }
  func.func @transform_2(%arg0: i32, %arg1: i32, %arg2: i32) -> (i32, i32) {
    %c0_i32 = arith.constant 0 : i32
    %c0_i32_0 = arith.constant 0 : i32
    return %c0_i32, %arg1 : i32, i32
  }
  func.func @transform_3(%arg0: i32, %arg1: i32, %arg2: i32) -> (i32, i32) {
    %c0_i32 = arith.constant 0 : i32
    return %arg0, %arg1 : i32, i32
  }
}

module attributes {stable_mosaic.version = 11 : i64} {
  func.func @_matmul_bias_kernel(%arg0: i32, %arg1: i32, %arg2: i32, %arg3: memref<256x384xbf16, #tpu.memory_space<vmem>>, %arg4: memref<384x128xbf16, #tpu.memory_space<vmem>>, %arg5: memref<1x128xf32, #tpu.memory_space<vmem>>, %arg6: memref<256x128xbf16, #tpu.memory_space<vmem>>, %arg7: memref<256x128xf32, #tpu.memory_space<vmem>>) attributes {dimension_semantics = [#tpu.dimension_semantics<parallel>, #tpu.dimension_semantics<parallel>, #tpu.dimension_semantics<arbitrary>], iteration_bounds = array<i64: 4, 1, 1>, scalar_prefetch = 0 : i64, scratch_operands = 1 : i64, tpu.core_type = #tpu.core_type<tc>, window_params = [{transform_indices = @transform_0, window_bounds = array<i64: 256, 384>}, {transform_indices = @transform_1, window_bounds = array<i64: 384, 128>}, {transform_indices = @transform_2, window_bounds = array<i64: 1, 128>}, {transform_indices = @transform_3, window_bounds = array<i64: 256, 128>}]} {
    %c0_i32 = arith.constant 0 : i32
    %0 = arith.cmpi eq, %arg2, %c0_i32 : i32
    %1 = arith.extui %0 : i1 to i32
    %c0_i32_0 = arith.constant 0 : i32
    %2 = arith.cmpi ne, %1, %c0_i32_0 : i32
    scf.if %2 {
      %cst_10 = arith.constant 0.000000e+00 : f32
      %12 = vector.broadcast %cst_10 : f32 to vector<256x128xf32>
      %c0_11 = arith.constant 0 : index
      %c0_12 = arith.constant 0 : index
      %13 = vector.load %arg7[%c0_11, %c0_12] : memref<256x128xf32, #tpu.memory_space<vmem>>, vector<256x128xf32>
      tpu.vector_store %arg7[%c0_11, %c0_12], %12 {strides = array<i32>} : memref<256x128xf32, #tpu.memory_space<vmem>>, vector<256x128xf32>,
    } else {
    }
    %c0 = arith.constant 0 : index
    %c0_1 = arith.constant 0 : index
    %3 = vector.load %arg7[%c0, %c0_1] : memref<256x128xf32, #tpu.memory_space<vmem>>, vector<256x128xf32>
    %c0_2 = arith.constant 0 : index
    %c0_3 = arith.constant 0 : index
    %4 = vector.load %arg3[%c0_2, %c0_3] : memref<256x384xbf16, #tpu.memory_space<vmem>>, vector<256x384xbf16>
    %c0_4 = arith.constant 0 : index
    %c0_5 = arith.constant 0 : index
    %5 = vector.load %arg4[%c0_4, %c0_5] : memref<384x128xbf16, #tpu.memory_space<vmem>>, vector<384x128xbf16>
    %cst = arith.constant dense<0.000000e+00> : vector<256x128xf32>
    %6 = tpu.matmul %4, %5, %cst {dimension_numbers = #tpu.dot_dimension_numbers<[1], [0], [0], [1], [0, 0, 1, 1], [], []>} : vector<256x384xbf16>, vector<384x128xbf16>, vector<256x128xf32> -> vector<256x128xf32>
    %7 = arith.addf %3, %6 : vector<256x128xf32>
    %c0_6 = arith.constant 0 : index
    %c0_7 = arith.constant 0 : index
    %8 = vector.load %arg7[%c0_6, %c0_7] : memref<256x128xf32, #tpu.memory_space<vmem>>, vector<256x128xf32>
    tpu.vector_store %arg7[%c0_6, %c0_7], %7 {strides = array<i32>} : memref<256x128xf32, #tpu.memory_space<vmem>>, vector<256x128xf32>,
    %c0_i32_8 = arith.constant 0 : i32
    %9 = arith.cmpi eq, %arg2, %c0_i32_8 : i32
    %10 = arith.extui %9 : i1 to i32
    %c0_i32_9 = arith.constant 0 : i32
    %11 = arith.cmpi ne, %10, %c0_i32_9 : i32
    scf.if %11 {
      %c0_10 = arith.constant 0 : index
      %c0_11 = arith.constant 0 : index
      %12 = vector.load %arg7[%c0_10, %c0_11] : memref<256x128xf32, #tpu.memory_space<vmem>>, vector<256x128xf32>
      %c0_12 = arith.constant 0 : index
      %c0_13 = arith.constant 0 : index
      %13 = vector.load %arg5[%c0_12, %c0_13] : memref<1x128xf32, #tpu.memory_space<vmem>>, vector<1x128xf32>
      %14 = vector.broadcast %13 : vector<1x128xf32> to vector<256x128xf32>
      %15 = arith.addf %12, %14 : vector<256x128xf32>
      %cst_14 = arith.constant 0.000000e+00 : f32
      %16 = vector.broadcast %cst_14 : f32 to vector<256x128xf32>
      %17 = arith.maximumf %15, %16 : vector<256x128xf32>
      %18 = arith.truncf %17 : vector<256x128xf32> to vector<256x128xbf16>
      %c0_15 = arith.constant 0 : index
      %c0_16 = arith.constant 0 : index
      %19 = vector.load %arg6[%c0_15, %c0_16] : memref<256x128xbf16, #tpu.memory_space<vmem>>, vector<256x128xbf16>
      tpu.vector_store %arg6[%c0_15, %c0_16], %18 {strides = array<i32>} : memref<256x128xbf16, #tpu.memory_space<vmem>>, vector<256x128xbf16>,
    } else {
    }
    return
  }
  func.func @transform_0(%arg0: i32, %arg1: i32, %arg2: i32) -> (i32, i32) {
    %c0_i32 = arith.constant 0 : i32
    return %arg0, %arg2 : i32, i32
  }
  func.func @transform_1(%arg0: i32, %arg1: i32, %arg2: i32) -> (i32, i32) {
    %c0_i32 = arith.constant 0 : i32
    return %arg2, %arg1 : i32, i32
  }
  func.func @transform_2(%arg0: i32, %arg1: i32, %arg2: i32) -> (i32, i32) {
    %c0_i32 = arith.constant 0 : i32
    %c0_i32_0 = arith.constant 0 : i32
    return %c0_i32, %arg1 : i32, i32
  }
  func.func @transform_3(%arg0: i32, %arg1: i32, %arg2: i32) -> (i32, i32) {
    %c0_i32 = arith.constant 0 : i32
    return %arg0, %arg1 : i32, i32
  }
}

</mosaic_0001>

<llo_original>
// kernel: _stem_forward.3
$region0: #{_stem_forward.3}
  #allocation0 [shape = 'u32[]', space=smem, size = 0x4, offset = 0x4, fixed_abs, tag = 'smem constant byte address 0x4 - core index']
  #allocation1 [shape = 'u32[144,128]{1,0:T(1,128)}', space=vmem, size = 0x12000, scoped, tag = 'internal scratch']
  #allocation2 [shape = 'f32[256,128]{1,0:T(8,128)}', space=vmem, size = 0x20000, scoped, tag = 'scratch operand']
  %s0 = inlined_call_operand.vmem [shape: bf16[1024,128], index: 0, kind: input, shape index: {}]
  %s1 = inlined_call_operand.vmem [shape: bf16[128,128], index: 1, kind: input, shape index: {}]
  %s2 = inlined_call_operand.vmem [shape: f32[1,128], index: 2, kind: input, shape index: {}]
  %s3 = inlined_call_operand.vmem [shape: bf16[1024,128], index: 3, kind: output, shape index: {}]
  %s4 = sld [smem:[#allocation0]]
  $region53: #{_stem_forward.3} parent=0
    _
  %s6 = ssub.s32 1, %s4
  %s7 = scalar_select 0, %s6, %s4
  loop: start=0, step=1, limit=6
  $region2: #{_stem_forward.3} parent=0 // loop_pre_header
    _
  $region3: #{_stem_forward.3} parent=0 // loop_header
    %s9 = sphi 0, %s13
    %p10 = scmp.ge.s32.totalorder %s9, 6
    %s16 = sphi 0, %s35
    %s17 = sphi 0, %s31
    %s18 = sphi 0, %s27
    %s19 = sphi 0, %s16
    %s20 = sphi 0, %s17
    %s21 = sphi 0, %s18
    %s22 = sphi 0, %s19
    %s23 = sphi 0, %s20
    %s24 = sphi 0, %s21
    %s40 = sphi 0, %s42
    %s43 = sphi 0, %s40
    %s44 = sphi 0, %s43
    %s60 = sphi 0, %s44
    %s68 = sphi 0, %s70
    %s71 = sphi 0, %s68
    %s72 = sphi 0, %s71
    %s88 = sphi 0, %s72
    %s94 = sphi 0, %s96
    %s97 = sphi 0, %s94
    %s98 = sphi 0, %s97
    %s114 = sphi 0, %s98
    %s122 = sphi 0, %s124
    %s125 = sphi 0, %s122
    %s126 = sphi 0, %s125
    %s142 = sphi 0, %s126
  $region4: #{_stem_forward.3} parent=0 // loop_header_branch
    %12 = sbr.rel (%p10) target = $region8
  $region5: #{_stem_forward.3} parent=0 // loop_body
    %s14 = ssub.s32 %s9, 1
    %s15 = ssub.s32 %s9, 2
    %s25 = sadd.s32 1, %s18
    %p26 = scmp.ge.s32.totalorder %s25, 1
    %s27 = scalar_select %p26, 0, %s25
    %s28 = sadd.s32 1, %s17
    %s29 = scalar_select %p26, %s28, %s17
    %p30 = scmp.ge.s32.totalorder %s29, 1
    %s31 = scalar_select %p30, 0, %s29
    %s32 = sadd.s32 1, %s16
    %s33 = scalar_select %p30, %s32, %s16
    %p34 = scmp.ge.s32.totalorder %s33, 4
    %s35 = scalar_select %p34, 0, %s33
    %s36 = ssub.s32 %s16, %s35
    %s37 = ssub.s32 %s18, %s27
    %s38 = sor.u32 %s36, %s37
    %p39 = scmp.eq.s32.totalorder %s38, 0
    %s41 = sadd.s32 %s40, 1
    %s42 = scalar_select %p39, %s40, %s41
    %p45 = pneg %p39
    %p46 = scmp.eq.s32.totalorder %s9, 3
    %p47 = por %p45, %p46
    %p48 = scmp.ne.s32.totalorder %s40, %s43
    %p49 = scmp.eq.s32.totalorder %s9, 0
    %p50 = por %p48, %p49
    %p51 = scmp.ne.s32.totalorder %s40, %s43
    %p52 = scmp.eq.s32.totalorder %s14, 3
    %p53 = por %p51, %p52
    %p54 = scmp.ne.s32.totalorder %s43, %s44
    %p55 = scmp.eq.s32.totalorder %s14, 0
    %p56 = por %p54, %p55
    %p57 = scmp.ne.s32.totalorder %s43, %s44
    %p58 = scmp.eq.s32.totalorder %s15, 3
    %p59 = por %p57, %p58
    %p61 = scmp.ne.s32.totalorder %s44, %s60
    %p62 = scmp.eq.s32.totalorder %s15, 0
    %p63 = por %p61, %p62
    %s64 = ssub.s32 %s18, %s27
    %s65 = ssub.s32 %s17, %s31
    %s66 = sor.u32 %s64, %s65
    %p67 = scmp.eq.s32.totalorder %s66, 0
    %s69 = sadd.s32 %s68, 1
    %s70 = scalar_select %p67, %s68, %s69
    %p73 = pneg %p67
    %p74 = scmp.eq.s32.totalorder %s9, 3
    %p75 = por %p73, %p74
    %p76 = scmp.ne.s32.totalorder %s68, %s71
    %p77 = scmp.eq.s32.totalorder %s9, 0
    %p78 = por %p76, %p77
    %p79 = scmp.ne.s32.totalorder %s68, %s71
    %p80 = scmp.eq.s32.totalorder %s14, 3
    %p81 = por %p79, %p80
    %p82 = scmp.ne.s32.totalorder %s71, %s72
    %p83 = scmp.eq.s32.totalorder %s14, 0
    %p84 = por %p82, %p83
    %p85 = scmp.ne.s32.totalorder %s71, %s72
    %p86 = scmp.eq.s32.totalorder %s15, 3
    %p87 = por %p85, %p86
    %p89 = scmp.ne.s32.totalorder %s72, %s88
    %p90 = scmp.eq.s32.totalorder %s15, 0
    %p91 = por %p89, %p90
    %s92 = ssub.s32 %s17, %s31
    %p93 = scmp.eq.s32.totalorder %s92, 0
    %s95 = sadd.s32 %s94, 1
    %s96 = scalar_select %p93, %s94, %s95
    %p99 = pneg %p93
    %p100 = scmp.eq.s32.totalorder %s9, 3
    %p101 = por %p99, %p100
    %p102 = scmp.ne.s32.totalorder %s94, %s97
    %p103 = scmp.eq.s32.totalorder %s9, 0
    %p104 = por %p102, %p103
    %p105 = scmp.ne.s32.totalorder %s94, %s97
    %p106 = scmp.eq.s32.totalorder %s14, 3
    %p107 = por %p105, %p106
    %p108 = scmp.ne.s32.totalorder %s97, %s98
    %p109 = scmp.eq.s32.totalorder %s14, 0
    %p110 = por %p108, %p109
    %p111 = scmp.ne.s32.totalorder %s97, %s98
    %p112 = scmp.eq.s32.totalorder %s15, 3
    %p113 = por %p111, %p112
    %p115 = scmp.ne.s32.totalorder %s98, %s114
    %p116 = scmp.eq.s32.totalorder %s15, 0
    %p117 = por %p115, %p116
    %s118 = ssub.s32 %s16, %s35
    %s119 = ssub.s32 %s17, %s31
    %s120 = sor.u32 %s118, %s119
    %p121 = scmp.eq.s32.totalorder %s120, 0
    %s123 = sadd.s32 %s122, 1
    %s124 = scalar_select %p121, %s122, %s123
    %p127 = pneg %p121
    %p128 = scmp.eq.s32.totalorder %s9, 3
    %p129 = por %p127, %p128
    %p130 = scmp.ne.s32.totalorder %s122, %s125
    %p131 = scmp.eq.s32.totalorder %s9, 0
    %p132 = por %p130, %p131
    %p133 = scmp.ne.s32.totalorder %s122, %s125
    %p134 = scmp.eq.s32.totalorder %s14, 3
    %p135 = por %p133, %p134
    %p136 = scmp.ne.s32.totalorder %s125, %s126
    %p137 = scmp.eq.s32.totalorder %s14, 0
    %p138 = por %p136, %p137
    %p139 = scmp.ne.s32.totalorder %s125, %s126
    %p140 = scmp.eq.s32.totalorder %s15, 3
    %p141 = por %p139, %p140
    %p143 = scmp.ne.s32.totalorder %s126, %s142
    %p144 = scmp.eq.s32.totalorder %s15, 0
    %p145 = por %p143, %p144
    %p146 = scmp.le.s32.totalorder 1, %s9
    %p147 = scmp.lt.s32.totalorder %s9, 5
    %p148 = pnand %p146, %p147
    %p149 = pneg %p148
    // Predicated region
    $region9: #{_stem_forward.3} parent=5 // pred_check
      _
    $region10: #{_stem_forward.3} parent=5 // pred_check_branch
      %151 = sbr.rel (%p148) target = $region12
    $region11: #{_stem_forward.3} parent=5 // pred_region
      %s152 = ssub.s32 %s9, 1
      // Predicated region
      $region13: #{_stem_forward.3} parent=11 // pred_check
        %p153 = pneg %p84
      $region14: #{_stem_forward.3} parent=11 // pred_check_branch
        %155 = sbr.rel (%p153) target = $region16
      $region15: #{_stem_forward.3} parent=11 // pred_region
        %s156 = smul.u32 16, %s21
        %p157 = scmp.lt.s32.totalorder %s156, 15
        %s158 = scalar_select %p157, %s156, 15
        %p159 = scmp.lt.s32.totalorder %s20, 0
        %s160 = scalar_select %p159, %s20, 0
        %s161 = sadd.s32 %s160, %s158
        %s162 = smul.addr %s161, 4
        %s163 = scalar_lea.vmem %s1, %s162
        %s164 = smul.u32 16, %s21
      $region16: #{_stem_forward.3} parent=11 // pred_fallthru
        _
      // Predicated region
      $region17: #{_stem_forward.3} parent=11 // pred_check
        %p165 = pneg %p110
      $region18: #{_stem_forward.3} parent=11 // pred_check_branch
        %167 = sbr.rel (%p165) target = $region20
      $region19: #{_stem_forward.3} parent=11 // pred_region
        %p168 = scmp.lt.s32.totalorder %s20, 0
        %s169 = scalar_select %p168, %s20, 0
        %s170 = scalar_lea.vmem %s2, %s169
      $region20: #{_stem_forward.3} parent=11 // pred_fallthru
        _
    $region12: #{_stem_forward.3} parent=5 // pred_fallthru
      _
    %p171 = scmp.lt.s32.totalorder %s9, 4
    // Predicated region
    $region21: #{_stem_forward.3} parent=5 // pred_check
      %p172 = pneg %p171
    $region22: #{_stem_forward.3} parent=5 // pred_check_branch
      %174 = sbr.rel (%p172) target = $region24
    $region23: #{_stem_forward.3} parent=5 // pred_region
      // Predicated region
      $region25: #{_stem_forward.3} parent=23 // pred_check
        %p175 = pneg %p50
      $region26: #{_stem_forward.3} parent=23 // pred_check_branch
        %177 = sbr.rel (%p175) target = $region28
      $region27: #{_stem_forward.3} parent=23 // pred_region
        %s178 = smul.u32 32, %s16
        %p179 = scmp.lt.s32.totalorder %s178, 127
        %s180 = scalar_select %p179, %s178, 127
        %p181 = scmp.lt.s32.totalorder %s18, 0
        %s182 = scalar_select %p181, %s18, 0
        %s183 = sadd.s32 %s182, %s180
        %s184 = smul.addr %s183, 4
        %s185 = scalar_lea.vmem %s0, %s184
        %s186 = smul.u32 32, %s16
      $region28: #{_stem_forward.3} parent=23 // pred_fallthru
        _
    $region24: #{_stem_forward.3} parent=5 // pred_fallthru
      _
    %p187 = scmp.le.s32.totalorder 1, %s9
    %p188 = scmp.lt.s32.totalorder %s9, 5
    %p189 = pnand %p187, %p188
    %p190 = pneg %p189
    // Predicated region
    $region29: #{_stem_forward.3} parent=5 // pred_check
      _
    $region30: #{_stem_forward.3} parent=5 // pred_check_branch
      %192 = sbr.rel (%p189) target = $region32
    $region31: #{_stem_forward.3} parent=5 // pred_region
      %s193 = ssub.s32 %s9, 1
      %s194 = smul.u32 32, %s19
      %p195 = scmp.lt.s32.totalorder %s194, 127
      %s196 = scalar_select %p195, %s194, 127
      %p197 = scmp.lt.s32.totalorder %s21, 0
      %s198 = scalar_select %p197, %s21, 0
      %s199 = sadd.s32 %s198, %s196
      %s200 = smul.addr %s199, 4
      %s201 = scalar_lea.vmem %s0, %s200
      %p202 = pneg %p56
      %p203 = pneg %p53
      %s204 = smul.u32 16, %s21
      %p205 = scmp.lt.s32.totalorder %s204, 15
      %s206 = scalar_select %p205, %s204, 15
      %p207 = scmp.lt.s32.totalorder %s20, 0
      %s208 = scalar_select %p207, %s20, 0
      %s209 = sadd.s32 %s208, %s206
      %s210 = smul.addr %s209, 4
      %s211 = scalar_lea.vmem %s1, %s210
      %p212 = pneg %p84
      %p213 = pneg %p81
      %p214 = scmp.lt.s32.totalorder %s20, 0
      %s215 = scalar_select %p214, %s20, 0
      %s216 = scalar_lea.vmem %s2, %s215
      %p217 = pneg %p110
      %p218 = pneg %p107
      %p219 = pneg %p138
      %p220 = pneg %p135
      %s221 = smul.u32 32, %s19
      %p222 = scmp.lt.s32.totalorder %s221, 127
      %s223 = scalar_select %p222, %s221, 127
      %p224 = scmp.lt.s32.totalorder %s20, 0
      %s225 = scalar_select %p224, %s20, 0
      %s226 = sadd.s32 %s225, %s223
      %s227 = smul.addr %s226, 4
      %s228 = scalar_lea.vmem %s3, %s227
      %s229 = smul.u32 32, %s19
      %p230 = scmp.lt.s32.totalorder %s229, 127
      %s231 = scalar_select %p230, %s229, 127
      %p232 = scmp.lt.s32.totalorder %s21, 0
      %s233 = scalar_select %p232, %s21, 0
      %s234 = sadd.s32 %s233, %s231
      %s235 = smul.addr %s234, 4
      %s236 = scalar_lea.vmem %s0, %s235
      %s237 = smul.u32 32, %s19
      %s238 = smul.u32 16, %s21
      %p239 = scmp.lt.s32.totalorder %s238, 15
      %s240 = scalar_select %p239, %s238, 15
      %p241 = scmp.lt.s32.totalorder %s20, 0
      %s242 = scalar_select %p241, %s20, 0
      %s243 = sadd.s32 %s242, %s240
      %s244 = smul.addr %s243, 4
      %s245 = scalar_lea.vmem %s1, %s244
      %s246 = smul.u32 16, %s21
      %p247 = scmp.lt.s32.totalorder %s20, 0
      %s248 = scalar_select %p247, %s20, 0
      %s249 = scalar_lea.vmem %s2, %s248
      %s250 = smul.u32 32, %s19
      %p251 = scmp.lt.s32.totalorder %s250, 127
      %s252 = scalar_select %p251, %s250, 127
      %p253 = scmp.lt.s32.totalorder %s20, 0
      %s254 = scalar_select %p253, %s20, 0
      %s255 = sadd.s32 %s254, %s252
      %s256 = smul.addr %s255, 4
      %s257 = scalar_lea.vmem %s3, %s256
      %s258 = smul.u32 32, %s19
      %p260 = scmp.eq.s32.totalorder %s21, 0
      // Predicated region
      $region33: #{_stem_forward.3} parent=31 // pred_check
        %p261 = pneg %p260
      $region34: #{_stem_forward.3} parent=31 // pred_check_branch
        %263 = sbr.rel (%p261) target = $region36
      $region35: #{_stem_forward.3} parent=31 // pred_region
        %264 = vst [vmem:[#allocation2] sm:$0xff] 0.0
        %265 = vst [vmem:[#allocation2 + $0x8] sm:$0xff] 0.0
        %266 = vst [vmem:[#allocation2 + $0x10] sm:$0xff] 0.0
        %267 = vst [vmem:[#allocation2 + $0x18] sm:$0xff] 0.0
        %268 = vst [vmem:[#allocation2 + $0x20] sm:$0xff] 0.0
        %269 = vst [vmem:[#allocation2 + $0x28] sm:$0xff] 0.0
        %270 = vst [vmem:[#allocation2 + $0x30] sm:$0xff] 0.0
        %271 = vst [vmem:[#allocation2 + $0x38] sm:$0xff] 0.0
        %272 = vst [vmem:[#allocation2 + $0x40] sm:$0xff] 0.0
        %273 = vst [vmem:[#allocation2 + $0x48] sm:$0xff] 0.0
        %274 = vst [vmem:[#allocation2 + $0x50] sm:$0xff] 0.0
        %275 = vst [vmem:[#allocation2 + $0x58] sm:$0xff] 0.0
        %276 = vst [vmem:[#allocation2 + $0x60] sm:$0xff] 0.0
        %277 = vst [vmem:[#allocation2 + $0x68] sm:$0xff] 0.0
        %278 = vst [vmem:[#allocation2 + $0x70] sm:$0xff] 0.0
        %279 = vst [vmem:[#allocation2 + $0x78] sm:$0xff] 0.0
        %280 = vst [vmem:[#allocation2 + $0x80] sm:$0xff] 0.0
        %281 = vst [vmem:[#allocation2 + $0x88] sm:$0xff] 0.0
        %282 = vst [vmem:[#allocation2 + $0x90] sm:$0xff] 0.0
        %283 = vst [vmem:[#allocation2 + $0x98] sm:$0xff] 0.0
        %284 = vst [vmem:[#allocation2 + $0xa0] sm:$0xff] 0.0
        %285 = vst [vmem:[#allocation2 + $0xa8] sm:$0xff] 0.0
        %286 = vst [vmem:[#allocation2 + $0xb0] sm:$0xff] 0.0
        %287 = vst [vmem:[#allocation2 + $0xb8] sm:$0xff] 0.0
        %288 = vst [vmem:[#allocation2 + $0xc0] sm:$0xff] 0.0
        %289 = vst [vmem:[#allocation2 + $0xc8] sm:$0xff] 0.0
        %290 = vst [vmem:[#allocation2 + $0xd0] sm:$0xff] 0.0
        %291 = vst [vmem:[#allocation2 + $0xd8] sm:$0xff] 0.0
        %292 = vst [vmem:[#allocation2 + $0xe0] sm:$0xff] 0.0
        %293 = vst [vmem:[#allocation2 + $0xe8] sm:$0xff] 0.0
        %294 = vst [vmem:[#allocation2 + $0xf0] sm:$0xff] 0.0
        %295 = vst [vmem:[#allocation2 + $0xf8] sm:$0xff] 0.0
      $region36: #{_stem_forward.3} parent=31 // pred_fallthru
        _
      %v296 = vld [vmem:[#allocation2] sm:$0xff]
      %v297 = vld [vmem:[#allocation2 + $0x8] sm:$0xff]
      %v298 = vld [vmem:[#allocation2 + $0x10] sm:$0xff]
      %v299 = vld [vmem:[#allocation2 + $0x18] sm:$0xff]
      %v300 = vld [vmem:[#allocation2 + $0x20] sm:$0xff]
      %v301 = vld [vmem:[#allocation2 + $0x28] sm:$0xff]
      %v302 = vld [vmem:[#allocation2 + $0x30] sm:$0xff]
      %v303 = vld [vmem:[#allocation2 + $0x38] sm:$0xff]
      %v304 = vld [vmem:[#allocation2 + $0x40] sm:$0xff]
      %v305 = vld [vmem:[#allocation2 + $0x48] sm:$0xff]
      %v306 = vld [vmem:[#allocation2 + $0x50] sm:$0xff]
      %v307 = vld [vmem:[#allocation2 + $0x58] sm:$0xff]
      %v308 = vld [vmem:[#allocation2 + $0x60] sm:$0xff]
      %v309 = vld [vmem:[#allocation2 + $0x68] sm:$0xff]
      %v310 = vld [vmem:[#allocation2 + $0x70] sm:$0xff]
      %v311 = vld [vmem:[#allocation2 + $0x78] sm:$0xff]
      %v312 = vld [vmem:[#allocation2 + $0x80] sm:$0xff]
      %v313 = vld [vmem:[#allocation2 + $0x88] sm:$0xff]
      %v314 = vld [vmem:[#allocation2 + $0x90] sm:$0xff]
      %v315 = vld [vmem:[#allocation2 + $0x98] sm:$0xff]
      %v316 = vld [vmem:[#allocation2 + $0xa0] sm:$0xff]
      %v317 = vld [vmem:[#allocation2 + $0xa8] sm:$0xff]
      %v318 = vld [vmem:[#allocation2 + $0xb0] sm:$0xff]
      %v319 = vld [vmem:[#allocation2 + $0xb8] sm:$0xff]
      %v320 = vld [vmem:[#allocation2 + $0xc0] sm:$0xff]
      %v321 = vld [vmem:[#allocation2 + $0xc8] sm:$0xff]
      %v322 = vld [vmem:[#allocation2 + $0xd0] sm:$0xff]
      %v323 = vld [vmem:[#allocation2 + $0xd8] sm:$0xff]
      %v324 = vld [vmem:[#allocation2 + $0xe0] sm:$0xff]
      %v325 = vld [vmem:[#allocation2 + $0xe8] sm:$0xff]
      %v326 = vld [vmem:[#allocation2 + $0xf0] sm:$0xff]
      %v327 = vld [vmem:[#allocation2 + $0xf8] sm:$0xff]
      %v328 = vld [vmem:[%s236] sm:$0xf]
      %v329 = vld [vmem:[%s236 + $0x4] sm:$0xf]
      %v330 = vld [vmem:[%s236 + $0x8] sm:$0xf]
      %v331 = vld [vmem:[%s236 + $0xc] sm:$0xf]
      %v332 = vld [vmem:[%s236 + $0x10] sm:$0xf]
      %v333 = vld [vmem:[%s236 + $0x14] sm:$0xf]
      %v334 = vld [vmem:[%s236 + $0x18] sm:$0xf]
      %v335 = vld [vmem:[%s236 + $0x1c] sm:$0xf]
      %v336 = vld [vmem:[%s236 + $0x20] sm:$0xf]
      %v337 = vld [vmem:[%s236 + $0x24] sm:$0xf]
      %v338 = vld [vmem:[%s236 + $0x28] sm:$0xf]
      %v339 = vld [vmem:[%s236 + $0x2c] sm:$0xf]
      %v340 = vld [vmem:[%s236 + $0x30] sm:$0xf]
      %v341 = vld [vmem:[%s236 + $0x34] sm:$0xf]
      %v342 = vld [vmem:[%s236 + $0x38] sm:$0xf]
      %v343 = vld [vmem:[%s236 + $0x3c] sm:$0xf]
      %v344 = vld [vmem:[%s236 + $0x40] sm:$0xf]
      %v345 = vld [vmem:[%s236 + $0x44] sm:$0xf]
      %v346 = vld [vmem:[%s236 + $0x48] sm:$0xf]
      %v347 = vld [vmem:[%s236 + $0x4c] sm:$0xf]
      %v348 = vld [vmem:[%s236 + $0x50] sm:$0xf]
      %v349 = vld [vmem:[%s236 + $0x54] sm:$0xf]
      %v350 = vld [vmem:[%s236 + $0x58] sm:$0xf]
      %v351 = vld [vmem:[%s236 + $0x5c] sm:$0xf]
      %v352 = vld [vmem:[%s236 + $0x60] sm:$0xf]
      %v353 = vld [vmem:[%s236 + $0x64] sm:$0xf]
      %v354 = vld [vmem:[%s236 + $0x68] sm:$0xf]
      %v355 = vld [vmem:[%s236 + $0x6c] sm:$0xf]
      %v356 = vld [vmem:[%s236 + $0x70] sm:$0xf]
      %v357 = vld [vmem:[%s236 + $0x74] sm:$0xf]
      %v358 = vld [vmem:[%s236 + $0x78] sm:$0xf]
      %v359 = vld [vmem:[%s236 + $0x7c] sm:$0xf]
      %v360 = vld [vmem:[%s245] sm:$0xf]
      %v361 = vld [vmem:[%s245 + $0x4] sm:$0xf]
      %v362 = vld [vmem:[%s245 + $0x8] sm:$0xf]
      %v363 = vld [vmem:[%s245 + $0xc] sm:$0xf]
      %v364 = vld [vmem:[%s245 + $0x10] sm:$0xf]
      %v365 = vld [vmem:[%s245 + $0x14] sm:$0xf]
      %v366 = vld [vmem:[%s245 + $0x18] sm:$0xf]
      %v367 = vld [vmem:[%s245 + $0x1c] sm:$0xf]
      %v368 = vld [vmem:[%s245 + $0x20] sm:$0xf]
      %v369 = vld [vmem:[%s245 + $0x24] sm:$0xf]
      %v370 = vld [vmem:[%s245 + $0x28] sm:$0xf]
      %v371 = vld [vmem:[%s245 + $0x2c] sm:$0xf]
      %v372 = vld [vmem:[%s245 + $0x30] sm:$0xf]
      %v373 = vld [vmem:[%s245 + $0x34] sm:$0xf]
      %v374 = vld [vmem:[%s245 + $0x38] sm:$0xf]
      %v375 = vld [vmem:[%s245 + $0x3c] sm:$0xf]
      %v408 = vunpack.c.l.b16 %v328
      %v409 = vunpack.c.l.b16 %v329
      %v410 = vunpack.c.l.b16 %v330
      %v411 = vunpack.c.l.b16 %v331
      %v412 = vunpack.c.l.b16 %v332
      %v413 = vunpack.c.l.b16 %v333
      %v414 = vunpack.c.l.b16 %v334
      %v415 = vunpack.c.l.b16 %v335
      %v416 = vunpack.c.l.b16 %v336
      %v417 = vunpack.c.l.b16 %v337
      %v418 = vunpack.c.l.b16 %v338
      %v419 = vunpack.c.l.b16 %v339
      %v420 = vunpack.c.l.b16 %v340
      %v421 = vunpack.c.l.b16 %v341
      %v422 = vunpack.c.l.b16 %v342
      %v423 = vunpack.c.l.b16 %v343
      %v424 = vunpack.c.l.b16 %v344
      %v425 = vunpack.c.l.b16 %v345
      %v426 = vunpack.c.l.b16 %v346
      %v427 = vunpack.c.l.b16 %v347
      %v428 = vunpack.c.l.b16 %v348
      %v429 = vunpack.c.l.b16 %v349
      %v430 = vunpack.c.l.b16 %v350
      %v431 = vunpack.c.l.b16 %v351
      %v432 = vunpack.c.l.b16 %v352
      %v433 = vunpack.c.l.b16 %v353
      %v434 = vunpack.c.l.b16 %v354
      %v435 = vunpack.c.l.b16 %v355
      %v436 = vunpack.c.l.b16 %v356
      %v437 = vunpack.c.l.b16 %v357
      %v438 = vunpack.c.l.b16 %v358
      %v439 = vunpack.c.l.b16 %v359
      %v440 = vpack.c.b16 %v409, %v408
      %v441 = vpack.c.b16 %v411, %v410
      %v442 = vpack.c.b16 %v413, %v412
      %v443 = vpack.c.b16 %v415, %v414
      %v444 = vpack.c.b16 %v417, %v416
      %v445 = vpack.c.b16 %v419, %v418
      %v446 = vpack.c.b16 %v421, %v420
      %v447 = vpack.c.b16 %v423, %v422
      %v448 = vpack.c.b16 %v425, %v424
      %v449 = vpack.c.b16 %v427, %v426
      %v450 = vpack.c.b16 %v429, %v428
      %v451 = vpack.c.b16 %v431, %v430
      %v452 = vpack.c.b16 %v433, %v432
      %v453 = vpack.c.b16 %v435, %v434
      %v454 = vpack.c.b16 %v437, %v436
      %v455 = vpack.c.b16 %v439, %v438
      %v488 = vunpack.c.l.b16 %v360
      %v489 = vunpack.c.l.b16 %v361
      %v490 = vunpack.c.l.b16 %v362
      %v491 = vunpack.c.l.b16 %v363
      %v492 = vunpack.c.l.b16 %v364
      %v493 = vunpack.c.l.b16 %v365
      %v494 = vunpack.c.l.b16 %v366
      %v495 = vunpack.c.l.b16 %v367
      %v496 = vunpack.c.l.b16 %v368
      %v497 = vunpack.c.l.b16 %v369
      %v498 = vunpack.c.l.b16 %v370
      %v499 = vunpack.c.l.b16 %v371
      %v500 = vunpack.c.l.b16 %v372
      %v501 = vunpack.c.l.b16 %v373
      %v502 = vunpack.c.l.b16 %v374
      %v503 = vunpack.c.l.b16 %v375
      %v504 = vpack.c.b16 %v489, %v488
      %v505 = vpack.c.b16 %v491, %v490
      %v506 = vpack.c.b16 %v493, %v492
      %v507 = vpack.c.b16 %v495, %v494
      %v508 = vpack.c.b16 %v497, %v496
      %v509 = vpack.c.b16 %v499, %v498
      %v510 = vpack.c.b16 %v501, %v500
      %v511 = vpack.c.b16 %v503, %v502
      %520 = vmatprep.subr.bf16.mxu0 0
      %521 = vmatpush1.bf16.msra.mxu0 %v504
      %522 = vmatprep.subr.bf16.mxu0 0
      %523 = vmatpush1.bf16.msra.mxu0 %v505
      %524 = vmatprep.subr.bf16.mxu0 0
      %525 = vmatpush1.bf16.msra.mxu0 %v506
      %526 = vmatprep.subr.bf16.mxu0 0
      %527 = vmatpush1.bf16.msra.mxu0 %v507
      %528 = vmatprep.subr.bf16.mxu0 0
      %529 = vmatpush1.bf16.msra.mxu0 %v508
      %530 = vmatprep.subr.bf16.mxu0 0
      %531 = vmatpush1.bf16.msra.mxu0 %v509
      %532 = vmatprep.subr.bf16.mxu0 0
      %533 = vmatpush1.bf16.msra.mxu0 %v510
      %534 = vmatprep.subr.bf16.mxu0 0
      %535 = vmatpush1.bf16.msra.mxu0 %v511
      %536 = vmatprep.subr.bf16.mxu0 0
      %537 = vmatpush1.bf16.msra.mxu0 0
      %538 = vmatprep.subr.bf16.mxu0 0
      %539 = vmatpush1.bf16.msra.mxu0 0
      %540 = vmatprep.subr.bf16.mxu0 0
      %541 = vmatpush1.bf16.msra.mxu0 0
      %542 = vmatprep.subr.bf16.mxu0 0
      %543 = vmatpush1.bf16.msra.mxu0 0
      %544 = vmatprep.subr.bf16.mxu0 0
      %545 = vmatpush1.bf16.msra.mxu0 0
      %546 = vmatprep.subr.bf16.mxu0 0
      %547 = vmatpush1.bf16.msra.mxu0 0
      %548 = vmatprep.subr.bf16.mxu0 0
      %549 = vmatpush1.bf16.msra.mxu0 0
      %550 = vmatprep.subr.bf16.mxu0 0
      %551 = vmatpush1.bf16.msra.mxu0 0
      %552 = vmatprep.mubr.bf16.mxu0 0
      %553 = vmatmul.mubr.bf16.gmra.mrb[0].mxu0 %v440
      %v554 = vpop.f32.mrb[0].mxu0
      %v555 = vadd.f32 0.0, %v554
      %v556 = vpop.f32.mrb[0].mxu0
      %v557 = vpop.f32.mrb[0].mxu0
      %v558 = vadd.f32 0.0, %v557
      %v559 = vpop.f32.mrb[0].mxu0
      %560 = vmatprep.mubr.bf16.mxu0 0
      %561 = vmatmul.mubr.bf16.gmra.mrb[0].mxu0 %v441
      %v562 = vpop.f32.mrb[0].mxu0
      %v563 = vadd.f32 0.0, %v562
      %v564 = vpop.f32.mrb[0].mxu0
      %v565 = vpop.f32.mrb[0].mxu0
      %v566 = vadd.f32 0.0, %v565
      %v567 = vpop.f32.mrb[0].mxu0
      %568 = vmatprep.mubr.bf16.mxu0 0
      %569 = vmatmul.mubr.bf16.gmra.mrb[0].mxu0 %v442
      %v570 = vpop.f32.mrb[0].mxu0
      %v571 = vadd.f32 0.0, %v570
      %v572 = vpop.f32.mrb[0].mxu0
      %v573 = vpop.f32.mrb[0].mxu0
      %v574 = vadd.f32 0.0, %v573
      %v575 = vpop.f32.mrb[0].mxu0
      %576 = vmatprep.mubr.bf16.mxu0 0
      %577 = vmatmul.mubr.bf16.gmra.mrb[0].mxu0 %v443
      %v578 = vpop.f32.mrb[0].mxu0
      %v579 = vadd.f32 0.0, %v578
      %v580 = vpop.f32.mrb[0].mxu0
      %v581 = vpop.f32.mrb[0].mxu0
      %v582 = vadd.f32 0.0, %v581
      %v583 = vpop.f32.mrb[0].mxu0
      %584 = vmatprep.mubr.bf16.mxu0 0
      %585 = vmatmul.mubr.bf16.gmra.mrb[0].mxu0 %v444
      %v586 = vpop.f32.mrb[0].mxu0
      %v587 = vadd.f32 0.0, %v586
      %v588 = vpop.f32.mrb[0].mxu0
      %v589 = vpop.f32.mrb[0].mxu0
      %v590 = vadd.f32 0.0, %v589
      %v591 = vpop.f32.mrb[0].mxu0
      %592 = vmatprep.mubr.bf16.mxu0 0
      %593 = vmatmul.mubr.bf16.gmra.mrb[0].mxu0 %v445
      %v594 = vpop.f32.mrb[0].mxu0
      %v595 = vadd.f32 0.0, %v594
      %v596 = vpop.f32.mrb[0].mxu0
      %v597 = vpop.f32.mrb[0].mxu0
      %v598 = vadd.f32 0.0, %v597
      %v599 = vpop.f32.mrb[0].mxu0
      %600 = vmatprep.mubr.bf16.mxu0 0
      %601 = vmatmul.mubr.bf16.gmra.mrb[0].mxu0 %v446
      %v602 = vpop.f32.mrb[0].mxu0
      %v603 = vadd.f32 0.0, %v602
      %v604 = vpop.f32.mrb[0].mxu0
      %v605 = vpop.f32.mrb[0].mxu0
      %v606 = vadd.f32 0.0, %v605
      %v607 = vpop.f32.mrb[0].mxu0
      %608 = vmatprep.mubr.bf16.mxu0 0
      %609 = vmatmul.mubr.bf16.gmra.mrb[0].mxu0 %v447
      %v610 = vpop.f32.mrb[0].mxu0
      %v611 = vadd.f32 0.0, %v610
      %v612 = vpop.f32.mrb[0].mxu0
      %v613 = vpop.f32.mrb[0].mxu0
      %v614 = vadd.f32 0.0, %v613
      %v615 = vpop.f32.mrb[0].mxu0
      %616 = vmatprep.mubr.bf16.mxu0 0
      %617 = vmatmul.mubr.bf16.gmra.mrb[0].mxu0 %v448
      %v618 = vpop.f32.mrb[0].mxu0
      %v619 = vadd.f32 0.0, %v618
      %v620 = vpop.f32.mrb[0].mxu0
      %v621 = vpop.f32.mrb[0].mxu0
      %v622 = vadd.f32 0.0, %v621
      %v623 = vpop.f32.mrb[0].mxu0
      %624 = vmatprep.mubr.bf16.mxu0 0
      %625 = vmatmul.mubr.bf16.gmra.mrb[0].mxu0 %v449
      %v626 = vpop.f32.mrb[0].mxu0
      %v627 = vadd.f32 0.0, %v626
      %v628 = vpop.f32.mrb[0].mxu0
      %v629 = vpop.f32.mrb[0].mxu0
      %v630 = vadd.f32 0.0, %v629
      %v631 = vpop.f32.mrb[0].mxu0
      %632 = vmatprep.mubr.bf16.mxu0 0
      %633 = vmatmul.mubr.bf16.gmra.mrb[0].mxu0 %v450
      %v634 = vpop.f32.mrb[0].mxu0
      %v635 = vadd.f32 0.0, %v634
      %v636 = vpop.f32.mrb[0].mxu0
      %v637 = vpop.f32.mrb[0].mxu0
      %v638 = vadd.f32 0.0, %v637
      %v639 = vpop.f32.mrb[0].mxu0
      %640 = vmatprep.mubr.bf16.mxu0 0
      %641 = vmatmul.mubr.bf16.gmra.mrb[0].mxu0 %v451
      %v642 = vpop.f32.mrb[0].mxu0
      %v643 = vadd.f32 0.0, %v642
      %v644 = vpop.f32.mrb[0].mxu0
      %v645 = vpop.f32.mrb[0].mxu0
      %v646 = vadd.f32 0.0, %v645
      %v647 = vpop.f32.mrb[0].mxu0
      %648 = vmatprep.mubr.bf16.mxu0 0
      %649 = vmatmul.mubr.bf16.gmra.mrb[0].mxu0 %v452
      %v650 = vpop.f32.mrb[0].mxu0
      %v651 = vadd.f32 0.0, %v650
      %v652 = vpop.f32.mrb[0].mxu0
      %v653 = vpop.f32.mrb[0].mxu0
      %v654 = vadd.f32 0.0, %v653
      %v655 = vpop.f32.mrb[0].mxu0
      %656 = vmatprep.mubr.bf16.mxu0 0
      %657 = vmatmul.mubr.bf16.gmra.mrb[0].mxu0 %v453
      %v658 = vpop.f32.mrb[0].mxu0
      %v659 = vadd.f32 0.0, %v658
      %v660 = vpop.f32.mrb[0].mxu0
      %v661 = vpop.f32.mrb[0].mxu0
      %v662 = vadd.f32 0.0, %v661
      %v663 = vpop.f32.mrb[0].mxu0
      %664 = vmatprep.mubr.bf16.mxu0 0
      %665 = vmatmul.mubr.bf16.gmra.mrb[0].mxu0 %v454
      %v666 = vpop.f32.mrb[0].mxu0
      %v667 = vadd.f32 0.0, %v666
      %v668 = vpop.f32.mrb[0].mxu0
      %v669 = vpop.f32.mrb[0].mxu0
      %v670 = vadd.f32 0.0, %v669
      %v671 = vpop.f32.mrb[0].mxu0
      %672 = vmatprep.mubr.bf16.mxu0 0
      %673 = vmatmul.mubr.bf16.gmra.mrb[0].mxu0 %v455
      %v674 = vpop.f32.mrb[0].mxu0
      %v675 = vadd.f32 0.0, %v674
      %v676 = vpop.f32.mrb[0].mxu0
      %v677 = vpop.f32.mrb[0].mxu0
      %v678 = vadd.f32 0.0, %v677
      %v679 = vpop.f32.mrb[0].mxu0
      %680 = vdwg.mxu0
      %v681 = vadd.f32 %v296, %v555
      %v682 = vadd.f32 %v297, %v558
      %v683 = vadd.f32 %v298, %v563
      %v684 = vadd.f32 %v299, %v566
      %v685 = vadd.f32 %v300, %v571
      %v686 = vadd.f32 %v301, %v574
      %v687 = vadd.f32 %v302, %v579
      %v688 = vadd.f32 %v303, %v582
      %v689 = vadd.f32 %v304, %v587
      %v690 = vadd.f32 %v305, %v590
      %v691 = vadd.f32 %v306, %v595
      %v692 = vadd.f32 %v307, %v598
      %v693 = vadd.f32 %v308, %v603
      %v694 = vadd.f32 %v309, %v606
      %v695 = vadd.f32 %v310, %v611
      %v696 = vadd.f32 %v311, %v614
      %v697 = vadd.f32 %v312, %v619
      %v698 = vadd.f32 %v313, %v622
      %v699 = vadd.f32 %v314, %v627
      %v700 = vadd.f32 %v315, %v630
      %v701 = vadd.f32 %v316, %v635
      %v702 = vadd.f32 %v317, %v638
      %v703 = vadd.f32 %v318, %v643
      %v704 = vadd.f32 %v319, %v646
      %v705 = vadd.f32 %v320, %v651
      %v706 = vadd.f32 %v321, %v654
      %v707 = vadd.f32 %v322, %v659
      %v708 = vadd.f32 %v323, %v662
      %v709 = vadd.f32 %v324, %v667
      %v710 = vadd.f32 %v325, %v670
      %v711 = vadd.f32 %v326, %v675
      %v712 = vadd.f32 %v327, %v678
      %713 = vst [vmem:[#allocation2] sm:$0xff] %v681
      %714 = vst [vmem:[#allocation2 + $0x8] sm:$0xff] %v682
      %715 = vst [vmem:[#allocation2 + $0x10] sm:$0xff] %v683
      %716 = vst [vmem:[#allocation2 + $0x18] sm:$0xff] %v684
      %717 = vst [vmem:[#allocation2 + $0x20] sm:$0xff] %v685
      %718 = vst [vmem:[#allocation2 + $0x28] sm:$0xff] %v686
      %719 = vst [vmem:[#allocation2 + $0x30] sm:$0xff] %v687
      %720 = vst [vmem:[#allocation2 + $0x38] sm:$0xff] %v688
      %721 = vst [vmem:[#allocation2 + $0x40] sm:$0xff] %v689
      %722 = vst [vmem:[#allocation2 + $0x48] sm:$0xff] %v690
      %723 = vst [vmem:[#allocation2 + $0x50] sm:$0xff] %v691
      %724 = vst [vmem:[#allocation2 + $0x58] sm:$0xff] %v692
      %725 = vst [vmem:[#allocation2 + $0x60] sm:$0xff] %v693
      %726 = vst [vmem:[#allocation2 + $0x68] sm:$0xff] %v694
      %727 = vst [vmem:[#allocation2 + $0x70] sm:$0xff] %v695
      %728 = vst [vmem:[#allocation2 + $0x78] sm:$0xff] %v696
      %729 = vst [vmem:[#allocation2 + $0x80] sm:$0xff] %v697
      %730 = vst [vmem:[#allocation2 + $0x88] sm:$0xff] %v698
      %731 = vst [vmem:[#allocation2 + $0x90] sm:$0xff] %v699
      %732 = vst [vmem:[#allocation2 + $0x98] sm:$0xff] %v700
      %733 = vst [vmem:[#allocation2 + $0xa0] sm:$0xff] %v701
      %734 = vst [vmem:[#allocation2 + $0xa8] sm:$0xff] %v702
      %735 = vst [vmem:[#allocation2 + $0xb0] sm:$0xff] %v703
      %736 = vst [vmem:[#allocation2 + $0xb8] sm:$0xff] %v704
      %737 = vst [vmem:[#allocation2 + $0xc0] sm:$0xff] %v705
      %738 = vst [vmem:[#allocation2 + $0xc8] sm:$0xff] %v706
      %739 = vst [vmem:[#allocation2 + $0xd0] sm:$0xff] %v707
      %740 = vst [vmem:[#allocation2 + $0xd8] sm:$0xff] %v708
      %741 = vst [vmem:[#allocation2 + $0xe0] sm:$0xff] %v709
      %742 = vst [vmem:[#allocation2 + $0xe8] sm:$0xff] %v710
      %743 = vst [vmem:[#allocation2 + $0xf0] sm:$0xff] %v711
      %744 = vst [vmem:[#allocation2 + $0xf8] sm:$0xff] %v712
      // Predicated region
      $region37: #{_stem_forward.3} parent=31 // pred_check
        %p745 = pneg %p260
      $region38: #{_stem_forward.3} parent=31 // pred_check_branch
        %747 = sbr.rel (%p745) target = $region40
      $region39: #{_stem_forward.3} parent=31 // pred_region
        %v748 = vld [vmem:[#allocation2] sm:$0xff]
        %v749 = vld [vmem:[#allocation2 + $0x8] sm:$0xff]
        %v750 = vld [vmem:[#allocation2 + $0x10] sm:$0xff]
        %v751 = vld [vmem:[#allocation2 + $0x18] sm:$0xff]
        %v752 = vld [vmem:[#allocation2 + $0x20] sm:$0xff]
        %v753 = vld [vmem:[#allocation2 + $0x28] sm:$0xff]
        %v754 = vld [vmem:[#allocation2 + $0x30] sm:$0xff]
        %v755 = vld [vmem:[#allocation2 + $0x38] sm:$0xff]
        %v756 = vld [vmem:[#allocation2 + $0x40] sm:$0xff]
        %v757 = vld [vmem:[#allocation2 + $0x48] sm:$0xff]
        %v758 = vld [vmem:[#allocation2 + $0x50] sm:$0xff]
        %v759 = vld [vmem:[#allocation2 + $0x58] sm:$0xff]
        %v760 = vld [vmem:[#allocation2 + $0x60] sm:$0xff]
        %v761 = vld [vmem:[#allocation2 + $0x68] sm:$0xff]
        %v762 = vld [vmem:[#allocation2 + $0x70] sm:$0xff]
        %v763 = vld [vmem:[#allocation2 + $0x78] sm:$0xff]
        %v764 = vld [vmem:[#allocation2 + $0x80] sm:$0xff]
        %v765 = vld [vmem:[#allocation2 + $0x88] sm:$0xff]
        %v766 = vld [vmem:[#allocation2 + $0x90] sm:$0xff]
        %v767 = vld [vmem:[#allocation2 + $0x98] sm:$0xff]
        %v768 = vld [vmem:[#allocation2 + $0xa0] sm:$0xff]
        %v769 = vld [vmem:[#allocation2 + $0xa8] sm:$0xff]
        %v770 = vld [vmem:[#allocation2 + $0xb0] sm:$0xff]
        %v771 = vld [vmem:[#allocation2 + $0xb8] sm:$0xff]
        %v772 = vld [vmem:[#allocation2 + $0xc0] sm:$0xff]
        %v773 = vld [vmem:[#allocation2 + $0xc8] sm:$0xff]
        %v774 = vld [vmem:[#allocation2 + $0xd0] sm:$0xff]
        %v775 = vld [vmem:[#allocation2 + $0xd8] sm:$0xff]
        %v776 = vld [vmem:[#allocation2 + $0xe0] sm:$0xff]
        %v777 = vld [vmem:[#allocation2 + $0xe8] sm:$0xff]
        %v778 = vld [vmem:[#allocation2 + $0xf0] sm:$0xff]
        %v779 = vld [vmem:[#allocation2 + $0xf8] sm:$0xff]
        %v780 = vld [vmem:[%s249] sm:$0x1]
        %v782 = vlaneseq
        %v783 = vshrl.u32 %v782, 7
        %v784 = vsub.s32 0, %v783
        %v785 = vrot.slane %v780, %v784
        %v787 = vadd.f32 %v748, %v785
        %v788 = vadd.f32 %v749, %v785
        %v789 = vadd.f32 %v750, %v785
        %v790 = vadd.f32 %v751, %v785
        %v791 = vadd.f32 %v752, %v785
        %v792 = vadd.f32 %v753, %v785
        %v793 = vadd.f32 %v754, %v785
        %v794 = vadd.f32 %v755, %v785
        %v795 = vadd.f32 %v756, %v785
        %v796 = vadd.f32 %v757, %v785
        %v797 = vadd.f32 %v758, %v785
        %v798 = vadd.f32 %v759, %v785
        %v799 = vadd.f32 %v760, %v785
        %v800 = vadd.f32 %v761, %v785
        %v801 = vadd.f32 %v762, %v785
        %v802 = vadd.f32 %v763, %v785
        %v803 = vadd.f32 %v764, %v785
        %v804 = vadd.f32 %v765, %v785
        %v805 = vadd.f32 %v766, %v785
        %v806 = vadd.f32 %v767, %v785
        %v807 = vadd.f32 %v768, %v785
        %v808 = vadd.f32 %v769, %v785
        %v809 = vadd.f32 %v770, %v785
        %v810 = vadd.f32 %v771, %v785
        %v811 = vadd.f32 %v772, %v785
        %v812 = vadd.f32 %v773, %v785
        %v813 = vadd.f32 %v774, %v785
        %v814 = vadd.f32 %v775, %v785
        %v815 = vadd.f32 %v776, %v785
        %v816 = vadd.f32 %v777, %v785
        %v817 = vadd.f32 %v778, %v785
        %v818 = vadd.f32 %v779, %v785
        %v819 = vmax.f32 %v787, 0.0
        %v820 = vmax.f32 %v788, 0.0
        %v821 = vmax.f32 %v789, 0.0
        %v822 = vmax.f32 %v790, 0.0
        %v823 = vmax.f32 %v791, 0.0
        %v824 = vmax.f32 %v792, 0.0
        %v825 = vmax.f32 %v793, 0.0
        %v826 = vmax.f32 %v794, 0.0
        %v827 = vmax.f32 %v795, 0.0
        %v828 = vmax.f32 %v796, 0.0
        %v829 = vmax.f32 %v797, 0.0
        %v830 = vmax.f32 %v798, 0.0
        %v831 = vmax.f32 %v799, 0.0
        %v832 = vmax.f32 %v800, 0.0
        %v833 = vmax.f32 %v801, 0.0
        %v834 = vmax.f32 %v802, 0.0
        %v835 = vmax.f32 %v803, 0.0
        %v836 = vmax.f32 %v804, 0.0
        %v837 = vmax.f32 %v805, 0.0
        %v838 = vmax.f32 %v806, 0.0
        %v839 = vmax.f32 %v807, 0.0
        %v840 = vmax.f32 %v808, 0.0
        %v841 = vmax.f32 %v809, 0.0
        %v842 = vmax.f32 %v810, 0.0
        %v843 = vmax.f32 %v811, 0.0
        %v844 = vmax.f32 %v812, 0.0
        %v845 = vmax.f32 %v813, 0.0
        %v846 = vmax.f32 %v814, 0.0
        %v847 = vmax.f32 %v815, 0.0
        %v848 = vmax.f32 %v816, 0.0
        %v849 = vmax.f32 %v817, 0.0
        %v850 = vmax.f32 %v818, 0.0
        %v851 = vpack.c.bf16 %v820, %v819
        %v852 = vpack.c.bf16 %v822, %v821
        %v853 = vpack.c.bf16 %v824, %v823
        %v854 = vpack.c.bf16 %v826, %v825
        %v855 = vpack.c.bf16 %v828, %v827
        %v856 = vpack.c.bf16 %v830, %v829
        %v857 = vpack.c.bf16 %v832, %v831
        %v858 = vpack.c.bf16 %v834, %v833
        %v859 = vpack.c.bf16 %v836, %v835
        %v860 = vpack.c.bf16 %v838, %v837
        %v861 = vpack.c.bf16 %v840, %v839
        %v862 = vpack.c.bf16 %v842, %v841
        %v863 = vpack.c.bf16 %v844, %v843
        %v864 = vpack.c.bf16 %v846, %v845
        %v865 = vpack.c.bf16 %v848, %v847
        %v866 = vpack.c.bf16 %v850, %v849
        %v883 = vunpack.c.l.b16 %v851
        %v884 = vunpack.c.h.b16 %v851
        %v885 = vunpack.c.l.b16 %v852
        %v886 = vunpack.c.h.b16 %v852
        %v887 = vunpack.c.l.b16 %v853
        %v888 = vunpack.c.h.b16 %v853
        %v889 = vunpack.c.l.b16 %v854
        %v890 = vunpack.c.h.b16 %v854
        %v891 = vunpack.c.l.b16 %v855
        %v892 = vunpack.c.h.b16 %v855
        %v893 = vunpack.c.l.b16 %v856
        %v894 = vunpack.c.h.b16 %v856
        %v895 = vunpack.c.l.b16 %v857
        %v896 = vunpack.c.h.b16 %v857
        %v897 = vunpack.c.l.b16 %v858
        %v898 = vunpack.c.h.b16 %v858
        %v899 = vunpack.c.l.b16 %v859
        %v900 = vunpack.c.h.b16 %v859
        %v901 = vunpack.c.l.b16 %v860
        %v902 = vunpack.c.h.b16 %v860
        %v903 = vunpack.c.l.b16 %v861
        %v904 = vunpack.c.h.b16 %v861
        %v905 = vunpack.c.l.b16 %v862
        %v906 = vunpack.c.h.b16 %v862
        %v907 = vunpack.c.l.b16 %v863
        %v908 = vunpack.c.h.b16 %v863
        %v909 = vunpack.c.l.b16 %v864
        %v910 = vunpack.c.h.b16 %v864
        %v911 = vunpack.c.l.b16 %v865
        %v912 = vunpack.c.h.b16 %v865
        %v913 = vunpack.c.l.b16 %v866
        %v914 = vunpack.c.h.b16 %v866
        %v915 = vpack.c.b16 %v883, %v883
        %v916 = vpack.c.b16 %v884, %v884
        %v917 = vpack.c.b16 %v885, %v885
        %v918 = vpack.c.b16 %v886, %v886
        %v919 = vpack.c.b16 %v887, %v887
        %v920 = vpack.c.b16 %v888, %v888
        %v921 = vpack.c.b16 %v889, %v889
        %v922 = vpack.c.b16 %v890, %v890
        %v923 = vpack.c.b16 %v891, %v891
        %v924 = vpack.c.b16 %v892, %v892
        %v925 = vpack.c.b16 %v893, %v893
        %v926 = vpack.c.b16 %v894, %v894
        %v927 = vpack.c.b16 %v895, %v895
        %v928 = vpack.c.b16 %v896, %v896
        %v929 = vpack.c.b16 %v897, %v897
        %v930 = vpack.c.b16 %v898, %v898
        %v931 = vpack.c.b16 %v899, %v899
        %v932 = vpack.c.b16 %v900, %v900
        %v933 = vpack.c.b16 %v901, %v901
        %v934 = vpack.c.b16 %v902, %v902
        %v935 = vpack.c.b16 %v903, %v903
        %v936 = vpack.c.b16 %v904, %v904
        %v937 = vpack.c.b16 %v905, %v905
        %v938 = vpack.c.b16 %v906, %v906
        %v939 = vpack.c.b16 %v907, %v907
        %v940 = vpack.c.b16 %v908, %v908
        %v941 = vpack.c.b16 %v909, %v909
        %v942 = vpack.c.b16 %v910, %v910
        %v943 = vpack.c.b16 %v911, %v911
        %v944 = vpack.c.b16 %v912, %v912
        %v945 = vpack.c.b16 %v913, %v913
        %v946 = vpack.c.b16 %v914, %v914
        %979 = vst [vmem:[%s257] sm:$0xf] %v915
        %980 = vst [vmem:[%s257 + $0x4] sm:$0xf] %v916
        %981 = vst [vmem:[%s257 + $0x8] sm:$0xf] %v917
        %982 = vst [vmem:[%s257 + $0xc] sm:$0xf] %v918
        %983 = vst [vmem:[%s257 + $0x10] sm:$0xf] %v919
        %984 = vst [vmem:[%s257 + $0x14] sm:$0xf] %v920
        %985 = vst [vmem:[%s257 + $0x18] sm:$0xf] %v921
        %986 = vst [vmem:[%s257 + $0x1c] sm:$0xf] %v922
        %987 = vst [vmem:[%s257 + $0x20] sm:$0xf] %v923
        %988 = vst [vmem:[%s257 + $0x24] sm:$0xf] %v924
        %989 = vst [vmem:[%s257 + $0x28] sm:$0xf] %v925
        %990 = vst [vmem:[%s257 + $0x2c] sm:$0xf] %v926
        %991 = vst [vmem:[%s257 + $0x30] sm:$0xf] %v927
        %992 = vst [vmem:[%s257 + $0x34] sm:$0xf] %v928
        %993 = vst [vmem:[%s257 + $0x38] sm:$0xf] %v929
        %994 = vst [vmem:[%s257 + $0x3c] sm:$0xf] %v930
        %995 = vst [vmem:[%s257 + $0x40] sm:$0xf] %v931
        %996 = vst [vmem:[%s257 + $0x44] sm:$0xf] %v932
        %997 = vst [vmem:[%s257 + $0x48] sm:$0xf] %v933
        %998 = vst [vmem:[%s257 + $0x4c] sm:$0xf] %v934
        %999 = vst [vmem:[%s257 + $0x50] sm:$0xf] %v935
        %1000 = vst [vmem:[%s257 + $0x54] sm:$0xf] %v936
        %1001 = vst [vmem:[%s257 + $0x58] sm:$0xf] %v937
        %1002 = vst [vmem:[%s257 + $0x5c] sm:$0xf] %v938
        %1003 = vst [vmem:[%s257 + $0x60] sm:$0xf] %v939
        %1004 = vst [vmem:[%s257 + $0x64] sm:$0xf] %v940
        %1005 = vst [vmem:[%s257 + $0x68] sm:$0xf] %v941
        %1006 = vst [vmem:[%s257 + $0x6c] sm:$0xf] %v942
        %1007 = vst [vmem:[%s257 + $0x70] sm:$0xf] %v943
        %1008 = vst [vmem:[%s257 + $0x74] sm:$0xf] %v944
        %1009 = vst [vmem:[%s257 + $0x78] sm:$0xf] %v945
        %1010 = vst [vmem:[%s257 + $0x7c] sm:$0xf] %v946
      $region40: #{_stem_forward.3} parent=31 // pred_fallthru
        _
      %s1011 = smul.u32 32, %s19
      %p1012 = scmp.lt.s32.totalorder %s1011, 127
      %s1013 = scalar_select %p1012, %s1011, 127
      %p1014 = scmp.lt.s32.totalorder %s20, 0
      %s1015 = scalar_select %p1014, %s20, 0
      %s1016 = sadd.s32 %s1015, %s1013
      %s1017 = smul.addr %s1016, 4
      %s1018 = scalar_lea.vmem %s3, %s1017
      // Predicated region
      $region41: #{_stem_forward.3} parent=31 // pred_check
        %p1019 = pneg %p135
      $region42: #{_stem_forward.3} parent=31 // pred_check_branch
        %1021 = sbr.rel (%p1019) target = $region44
      $region43: #{_stem_forward.3} parent=31 // pred_region
        %s1022 = smul.u32 32, %s19
      $region44: #{_stem_forward.3} parent=31 // pred_fallthru
        _
    $region32: #{_stem_forward.3} parent=5 // pred_fallthru
      _
    %p1023 = scmp.le.s32.totalorder 2, %s9
    // Predicated region
    $region45: #{_stem_forward.3} parent=5 // pred_check
      %p1024 = pneg %p1023
    $region46: #{_stem_forward.3} parent=5 // pred_check_branch
      %1026 = sbr.rel (%p1024) target = $region48
    $region47: #{_stem_forward.3} parent=5 // pred_region
      %s1027 = ssub.s32 %s9, 2
      // Predicated region
      $region49: #{_stem_forward.3} parent=47 // pred_check
        %p1028 = pneg %p141
      $region50: #{_stem_forward.3} parent=47 // pred_check_branch
        %1030 = sbr.rel (%p1028) target = $region52
      $region51: #{_stem_forward.3} parent=47 // pred_region
        %s1031 = smul.u32 32, %s22
        %p1032 = scmp.lt.s32.totalorder %s1031, 127
        %s1033 = scalar_select %p1032, %s1031, 127
        %p1034 = scmp.lt.s32.totalorder %s23, 0
        %s1035 = scalar_select %p1034, %s23, 0
        %s1036 = sadd.s32 %s1035, %s1033
        %s1037 = smul.addr %s1036, 4
        %s1038 = scalar_lea.vmem %s3, %s1037
      $region52: #{_stem_forward.3} parent=47 // pred_fallthru
        _
    $region48: #{_stem_forward.3} parent=5 // pred_fallthru
      _
  $region6: #{_stem_forward.3} parent=0 // loop_footer
    %s13 = sadd.s32 1, %s9
  $region7: #{_stem_forward.3} parent=0 // loop_footer_branch
    %8 = sbr.rel target = $region3
  $region8: #{_stem_forward.3} parent=0 // loop_exit
    _

// kernel: _stem_forward.4
$region0: #{_stem_forward.4}
  #allocation0 [shape = 'u32[]', space=smem, size = 0x4, offset = 0x4, fixed_abs, tag = 'smem constant byte address 0x4 - core index']
  #allocation1 [shape = 'u32[144,128]{1,0:T(1,128)}', space=vmem, size = 0x12000, scoped, tag = 'internal scratch']
  #allocation2 [shape = 'f32[256,128]{1,0:T(8,128)}', space=vmem, size = 0x20000, scoped, tag = 'scratch operand']
  %s0 = inlined_call_operand.vmem [shape: bf16[1024,384], index: 0, kind: input, shape index: {}]
  %s1 = inlined_call_operand.vmem [shape: bf16[384,128], index: 1, kind: input, shape index: {}]
  %s2 = inlined_call_operand.vmem [shape: f32[1,128], index: 2, kind: input, shape index: {}]
  %s3 = inlined_call_operand.vmem [shape: bf16[1024,128], index: 3, kind: output, shape index: {}]
  %s4 = sld [smem:[#allocation0]]
  $region53: #{_stem_forward.4} parent=0
    _
  %s6 = ssub.s32 1, %s4
  %s7 = scalar_select 0, %s6, %s4
  loop: start=0, step=1, limit=6
  $region2: #{_stem_forward.4} parent=0 // loop_pre_header
    _
  $region3: #{_stem_forward.4} parent=0 // loop_header
    %s9 = sphi 0, %s13
    %p10 = scmp.ge.s32.totalorder %s9, 6
    %s16 = sphi 0, %s35
    %s17 = sphi 0, %s31
    %s18 = sphi 0, %s27
    %s19 = sphi 0, %s16
    %s20 = sphi 0, %s17
    %s21 = sphi 0, %s18
    %s22 = sphi 0, %s19
    %s23 = sphi 0, %s20
    %s24 = sphi 0, %s21
    %s40 = sphi 0, %s42
    %s43 = sphi 0, %s40
    %s44 = sphi 0, %s43
    %s60 = sphi 0, %s44
    %s68 = sphi 0, %s70
    %s71 = sphi 0, %s68
    %s72 = sphi 0, %s71
    %s88 = sphi 0, %s72
    %s94 = sphi 0, %s96
    %s97 = sphi 0, %s94
    %s98 = sphi 0, %s97
    %s114 = sphi 0, %s98
    %s122 = sphi 0, %s124
    %s125 = sphi 0, %s122
    %s126 = sphi 0, %s125
    %s142 = sphi 0, %s126
  $region4: #{_stem_forward.4} parent=0 // loop_header_branch
    %12 = sbr.rel (%p10) target = $region8
  $region5: #{_stem_forward.4} parent=0 // loop_body
    %s14 = ssub.s32 %s9, 1
    %s15 = ssub.s32 %s9, 2
    %s25 = sadd.s32 1, %s18
    %p26 = scmp.ge.s32.totalorder %s25, 1
    %s27 = scalar_select %p26, 0, %s25
    %s28 = sadd.s32 1, %s17
    %s29 = scalar_select %p26, %s28, %s17
    %p30 = scmp.ge.s32.totalorder %s29, 1
    %s31 = scalar_select %p30, 0, %s29
    %s32 = sadd.s32 1, %s16
    %s33 = scalar_select %p30, %s32, %s16
    %p34 = scmp.ge.s32.totalorder %s33, 4
    %s35 = scalar_select %p34, 0, %s33
    %s36 = ssub.s32 %s16, %s35
    %s37 = ssub.s32 %s18, %s27
    %s38 = sor.u32 %s36, %s37
    %p39 = scmp.eq.s32.totalorder %s38, 0
    %s41 = sadd.s32 %s40, 1
    %s42 = scalar_select %p39, %s40, %s41
    %p45 = pneg %p39
    %p46 = scmp.eq.s32.totalorder %s9, 3
    %p47 = por %p45, %p46
    %p48 = scmp.ne.s32.totalorder %s40, %s43
    %p49 = scmp.eq.s32.totalorder %s9, 0
    %p50 = por %p48, %p49
    %p51 = scmp.ne.s32.totalorder %s40, %s43
    %p52 = scmp.eq.s32.totalorder %s14, 3
    %p53 = por %p51, %p52
    %p54 = scmp.ne.s32.totalorder %s43, %s44
    %p55 = scmp.eq.s32.totalorder %s14, 0
    %p56 = por %p54, %p55
    %p57 = scmp.ne.s32.totalorder %s43, %s44
    %p58 = scmp.eq.s32.totalorder %s15, 3
    %p59 = por %p57, %p58
    %p61 = scmp.ne.s32.totalorder %s44, %s60
    %p62 = scmp.eq.s32.totalorder %s15, 0
    %p63 = por %p61, %p62
    %s64 = ssub.s32 %s18, %s27
    %s65 = ssub.s32 %s17, %s31
    %s66 = sor.u32 %s64, %s65
    %p67 = scmp.eq.s32.totalorder %s66, 0
    %s69 = sadd.s32 %s68, 1
    %s70 = scalar_select %p67, %s68, %s69
    %p73 = pneg %p67
    %p74 = scmp.eq.s32.totalorder %s9, 3
    %p75 = por %p73, %p74
    %p76 = scmp.ne.s32.totalorder %s68, %s71
    %p77 = scmp.eq.s32.totalorder %s9, 0
    %p78 = por %p76, %p77
    %p79 = scmp.ne.s32.totalorder %s68, %s71
    %p80 = scmp.eq.s32.totalorder %s14, 3
    %p81 = por %p79, %p80
    %p82 = scmp.ne.s32.totalorder %s71, %s72
    %p83 = scmp.eq.s32.totalorder %s14, 0
    %p84 = por %p82, %p83
    %p85 = scmp.ne.s32.totalorder %s71, %s72
    %p86 = scmp.eq.s32.totalorder %s15, 3
    %p87 = por %p85, %p86
    %p89 = scmp.ne.s32.totalorder %s72, %s88
    %p90 = scmp.eq.s32.totalorder %s15, 0
    %p91 = por %p89, %p90
    %s92 = ssub.s32 %s17, %s31
    %p93 = scmp.eq.s32.totalorder %s92, 0
    %s95 = sadd.s32 %s94, 1
    %s96 = scalar_select %p93, %s94, %s95
    %p99 = pneg %p93
    %p100 = scmp.eq.s32.totalorder %s9, 3
    %p101 = por %p99, %p100
    %p102 = scmp.ne.s32.totalorder %s94, %s97
    %p103 = scmp.eq.s32.totalorder %s9, 0
    %p104 = por %p102, %p103
    %p105 = scmp.ne.s32.totalorder %s94, %s97
    %p106 = scmp.eq.s32.totalorder %s14, 3
    %p107 = por %p105, %p106
    %p108 = scmp.ne.s32.totalorder %s97, %s98
    %p109 = scmp.eq.s32.totalorder %s14, 0
    %p110 = por %p108, %p109
    %p111 = scmp.ne.s32.totalorder %s97, %s98
    %p112 = scmp.eq.s32.totalorder %s15, 3
    %p113 = por %p111, %p112
    %p115 = scmp.ne.s32.totalorder %s98, %s114
    %p116 = scmp.eq.s32.totalorder %s15, 0
    %p117 = por %p115, %p116
    %s118 = ssub.s32 %s16, %s35
    %s119 = ssub.s32 %s17, %s31
    %s120 = sor.u32 %s118, %s119
    %p121 = scmp.eq.s32.totalorder %s120, 0
    %s123 = sadd.s32 %s122, 1
    %s124 = scalar_select %p121, %s122, %s123
    %p127 = pneg %p121
    %p128 = scmp.eq.s32.totalorder %s9, 3
    %p129 = por %p127, %p128
    %p130 = scmp.ne.s32.totalorder %s122, %s125
    %p131 = scmp.eq.s32.totalorder %s9, 0
    %p132 = por %p130, %p131
    %p133 = scmp.ne.s32.totalorder %s122, %s125
    %p134 = scmp.eq.s32.totalorder %s14, 3
    %p135 = por %p133, %p134
    %p136 = scmp.ne.s32.totalorder %s125, %s126
    %p137 = scmp.eq.s32.totalorder %s14, 0
    %p138 = por %p136, %p137
    %p139 = scmp.ne.s32.totalorder %s125, %s126
    %p140 = scmp.eq.s32.totalorder %s15, 3
    %p141 = por %p139, %p140
    %p143 = scmp.ne.s32.totalorder %s126, %s142
    %p144 = scmp.eq.s32.totalorder %s15, 0
    %p145 = por %p143, %p144
    %p146 = scmp.le.s32.totalorder 1, %s9
    %p147 = scmp.lt.s32.totalorder %s9, 5
    %p148 = pnand %p146, %p147
    %p149 = pneg %p148
    // Predicated region
    $region9: #{_stem_forward.4} parent=5 // pred_check
      _
    $region10: #{_stem_forward.4} parent=5 // pred_check_branch
      %151 = sbr.rel (%p148) target = $region12
    $region11: #{_stem_forward.4} parent=5 // pred_region
      %s152 = ssub.s32 %s9, 1
      // Predicated region
      $region13: #{_stem_forward.4} parent=11 // pred_check
        %p153 = pneg %p84
      $region14: #{_stem_forward.4} parent=11 // pred_check_branch
        %155 = sbr.rel (%p153) target = $region16
      $region15: #{_stem_forward.4} parent=11 // pred_region
        %s156 = smul.u32 48, %s21
        %p157 = scmp.lt.s32.totalorder %s156, 47
        %s158 = scalar_select %p157, %s156, 47
        %p159 = scmp.lt.s32.totalorder %s20, 0
        %s160 = scalar_select %p159, %s20, 0
        %s161 = sadd.s32 %s160, %s158
        %s162 = smul.addr %s161, 4
        %s163 = scalar_lea.vmem %s1, %s162
        %s164 = smul.u32 48, %s21
      $region16: #{_stem_forward.4} parent=11 // pred_fallthru
        _
      // Predicated region
      $region17: #{_stem_forward.4} parent=11 // pred_check
        %p165 = pneg %p110
      $region18: #{_stem_forward.4} parent=11 // pred_check_branch
        %167 = sbr.rel (%p165) target = $region20
      $region19: #{_stem_forward.4} parent=11 // pred_region
        %p168 = scmp.lt.s32.totalorder %s20, 0
        %s169 = scalar_select %p168, %s20, 0
        %s170 = scalar_lea.vmem %s2, %s169
      $region20: #{_stem_forward.4} parent=11 // pred_fallthru
        _
    $region12: #{_stem_forward.4} parent=5 // pred_fallthru
      _
    %p171 = scmp.lt.s32.totalorder %s9, 4
    // Predicated region
    $region21: #{_stem_forward.4} parent=5 // pred_check
      %p172 = pneg %p171
    $region22: #{_stem_forward.4} parent=5 // pred_check_branch
      %174 = sbr.rel (%p172) target = $region24
    $region23: #{_stem_forward.4} parent=5 // pred_region
      // Predicated region
      $region25: #{_stem_forward.4} parent=23 // pred_check
        %p175 = pneg %p50
      $region26: #{_stem_forward.4} parent=23 // pred_check_branch
        %177 = sbr.rel (%p175) target = $region28
      $region27: #{_stem_forward.4} parent=23 // pred_region
        %s178 = smul.u32 32, %s16
        %s179 = smul.u32 3, %s18
        %p180 = scmp.lt.s32.totalorder %s178, 127
        %s181 = scalar_select %p180, %s178, 127
        %p182 = scmp.lt.s32.totalorder %s179, 2
        %s183 = scalar_select %p182, %s179, 2
        %s184 = smul.addr %s181, 3
        %s185 = sadd.s32 %s183, %s184
        %s186 = smul.addr %s185, 4
        %s187 = scalar_lea.vmem %s0, %s186
        %s188 = smul.u32 32, %s16
        %s189 = smul.u32 3, %s18
      $region28: #{_stem_forward.4} parent=23 // pred_fallthru
        _
    $region24: #{_stem_forward.4} parent=5 // pred_fallthru
      _
    %p190 = scmp.le.s32.totalorder 1, %s9
    %p191 = scmp.lt.s32.totalorder %s9, 5
    %p192 = pnand %p190, %p191
    %p193 = pneg %p192
    // Predicated region
    $region29: #{_stem_forward.4} parent=5 // pred_check
      _
    $region30: #{_stem_forward.4} parent=5 // pred_check_branch
      %195 = sbr.rel (%p192) target = $region32
    $region31: #{_stem_forward.4} parent=5 // pred_region
      %s196 = ssub.s32 %s9, 1
      %s197 = smul.u32 32, %s19
      %s198 = smul.u32 3, %s21
      %p199 = scmp.lt.s32.totalorder %s197, 127
      %s200 = scalar_select %p199, %s197, 127
      %p201 = scmp.lt.s32.totalorder %s198, 2
      %s202 = scalar_select %p201, %s198, 2
      %s203 = smul.addr %s200, 3
      %s204 = sadd.s32 %s202, %s203
      %s205 = smul.addr %s204, 4
      %s206 = scalar_lea.vmem %s0, %s205
      %p207 = pneg %p56
      %p208 = pneg %p53
      %s209 = smul.u32 48, %s21
      %p210 = scmp.lt.s32.totalorder %s209, 47
      %s211 = scalar_select %p210, %s209, 47
      %p212 = scmp.lt.s32.totalorder %s20, 0
      %s213 = scalar_select %p212, %s20, 0
      %s214 = sadd.s32 %s213, %s211
      %s215 = smul.addr %s214, 4
      %s216 = scalar_lea.vmem %s1, %s215
      %p217 = pneg %p84
      %p218 = pneg %p81
      %p219 = scmp.lt.s32.totalorder %s20, 0
      %s220 = scalar_select %p219, %s20, 0
      %s221 = scalar_lea.vmem %s2, %s220
      %p222 = pneg %p110
      %p223 = pneg %p107
      %p224 = pneg %p138
      %p225 = pneg %p135
      %s226 = smul.u32 32, %s19
      %p227 = scmp.lt.s32.totalorder %s226, 127
      %s228 = scalar_select %p227, %s226, 127
      %p229 = scmp.lt.s32.totalorder %s20, 0
      %s230 = scalar_select %p229, %s20, 0
      %s231 = sadd.s32 %s230, %s228
      %s232 = smul.addr %s231, 4
      %s233 = scalar_lea.vmem %s3, %s232
      %s234 = smul.u32 32, %s19
      %s235 = smul.u32 3, %s21
      %p236 = scmp.lt.s32.totalorder %s234, 127
      %s237 = scalar_select %p236, %s234, 127
      %p238 = scmp.lt.s32.totalorder %s235, 2
      %s239 = scalar_select %p238, %s235, 2
      %s240 = smul.addr %s237, 3
      %s241 = sadd.s32 %s239, %s240
      %s242 = smul.addr %s241, 4
      %s243 = scalar_lea.vmem %s0, %s242
      %s244 = smul.u32 32, %s19
      %s245 = smul.u32 3, %s21
      %s246 = smul.u32 48, %s21
      %p247 = scmp.lt.s32.totalorder %s246, 47
      %s248 = scalar_select %p247, %s246, 47
      %p249 = scmp.lt.s32.totalorder %s20, 0
      %s250 = scalar_select %p249, %s20, 0
      %s251 = sadd.s32 %s250, %s248
      %s252 = smul.addr %s251, 4
      %s253 = scalar_lea.vmem %s1, %s252
      %s254 = smul.u32 48, %s21
      %p255 = scmp.lt.s32.totalorder %s20, 0
      %s256 = scalar_select %p255, %s20, 0
      %s257 = scalar_lea.vmem %s2, %s256
      %s258 = smul.u32 32, %s19
      %p259 = scmp.lt.s32.totalorder %s258, 127
      %s260 = scalar_select %p259, %s258, 127
      %p261 = scmp.lt.s32.totalorder %s20, 0
      %s262 = scalar_select %p261, %s20, 0
      %s263 = sadd.s32 %s262, %s260
      %s264 = smul.addr %s263, 4
      %s265 = scalar_lea.vmem %s3, %s264
      %s266 = smul.u32 32, %s19
      %p268 = scmp.eq.s32.totalorder %s21, 0
      // Predicated region
      $region33: #{_stem_forward.4} parent=31 // pred_check
        %p269 = pneg %p268
      $region34: #{_stem_forward.4} parent=31 // pred_check_branch
        %271 = sbr.rel (%p269) target = $region36
      $region35: #{_stem_forward.4} parent=31 // pred_region
        %272 = vst [vmem:[#allocation2] sm:$0xff] 0.0
        %273 = vst [vmem:[#allocation2 + $0x8] sm:$0xff] 0.0
        %274 = vst [vmem:[#allocation2 + $0x10] sm:$0xff] 0.0
        %275 = vst [vmem:[#allocation2 + $0x18] sm:$0xff] 0.0
        %276 = vst [vmem:[#allocation2 + $0x20] sm:$0xff] 0.0
        %277 = vst [vmem:[#allocation2 + $0x28] sm:$0xff] 0.0
        %278 = vst [vmem:[#allocation2 + $0x30] sm:$0xff] 0.0
        %279 = vst [vmem:[#allocation2 + $0x38] sm:$0xff] 0.0
        %280 = vst [vmem:[#allocation2 + $0x40] sm:$0xff] 0.0
        %281 = vst [vmem:[#allocation2 + $0x48] sm:$0xff] 0.0
        %282 = vst [vmem:[#allocation2 + $0x50] sm:$0xff] 0.0
        %283 = vst [vmem:[#allocation2 + $0x58] sm:$0xff] 0.0
        %284 = vst [vmem:[#allocation2 + $0x60] sm:$0xff] 0.0
        %285 = vst [vmem:[#allocation2 + $0x68] sm:$0xff] 0.0
        %286 = vst [vmem:[#allocation2 + $0x70] sm:$0xff] 0.0
        %287 = vst [vmem:[#allocation2 + $0x78] sm:$0xff] 0.0
        %288 = vst [vmem:[#allocation2 + $0x80] sm:$0xff] 0.0
        %289 = vst [vmem:[#allocation2 + $0x88] sm:$0xff] 0.0
        %290 = vst [vmem:[#allocation2 + $0x90] sm:$0xff] 0.0
        %291 = vst [vmem:[#allocation2 + $0x98] sm:$0xff] 0.0
        %292 = vst [vmem:[#allocation2 + $0xa0] sm:$0xff] 0.0
        %293 = vst [vmem:[#allocation2 + $0xa8] sm:$0xff] 0.0
        %294 = vst [vmem:[#allocation2 + $0xb0] sm:$0xff] 0.0
        %295 = vst [vmem:[#allocation2 + $0xb8] sm:$0xff] 0.0
        %296 = vst [vmem:[#allocation2 + $0xc0] sm:$0xff] 0.0
        %297 = vst [vmem:[#allocation2 + $0xc8] sm:$0xff] 0.0
        %298 = vst [vmem:[#allocation2 + $0xd0] sm:$0xff] 0.0
        %299 = vst [vmem:[#allocation2 + $0xd8] sm:$0xff] 0.0
        %300 = vst [vmem:[#allocation2 + $0xe0] sm:$0xff] 0.0
        %301 = vst [vmem:[#allocation2 + $0xe8] sm:$0xff] 0.0
        %302 = vst [vmem:[#allocation2 + $0xf0] sm:$0xff] 0.0
        %303 = vst [vmem:[#allocation2 + $0xf8] sm:$0xff] 0.0
      $region36: #{_stem_forward.4} parent=31 // pred_fallthru
        _
      %v304 = vld [vmem:[#allocation2] sm:$0xff]
      %v305 = vld [vmem:[#allocation2 + $0x8] sm:$0xff]
      %v306 = vld [vmem:[#allocation2 + $0x10] sm:$0xff]
      %v307 = vld [vmem:[#allocation2 + $0x18] sm:$0xff]
      %v308 = vld [vmem:[#allocation2 + $0x20] sm:$0xff]
      %v309 = vld [vmem:[#allocation2 + $0x28] sm:$0xff]
      %v310 = vld [vmem:[#allocation2 + $0x30] sm:$0xff]
      %v311 = vld [vmem:[#allocation2 + $0x38] sm:$0xff]
      %v312 = vld [vmem:[#allocation2 + $0x40] sm:$0xff]
      %v313 = vld [vmem:[#allocation2 + $0x48] sm:$0xff]
      %v314 = vld [vmem:[#allocation2 + $0x50] sm:$0xff]
      %v315 = vld [vmem:[#allocation2 + $0x58] sm:$0xff]
      %v316 = vld [vmem:[#allocation2 + $0x60] sm:$0xff]
      %v317 = vld [vmem:[#allocation2 + $0x68] sm:$0xff]
      %v318 = vld [vmem:[#allocation2 + $0x70] sm:$0xff]
      %v319 = vld [vmem:[#allocation2 + $0x78] sm:$0xff]
      %v320 = vld [vmem:[#allocation2 + $0x80] sm:$0xff]
      %v321 = vld [vmem:[#allocation2 + $0x88] sm:$0xff]
      %v322 = vld [vmem:[#allocation2 + $0x90] sm:$0xff]
      %v323 = vld [vmem:[#allocation2 + $0x98] sm:$0xff]
      %v324 = vld [vmem:[#allocation2 + $0xa0] sm:$0xff]
      %v325 = vld [vmem:[#allocation2 + $0xa8] sm:$0xff]
      %v326 = vld [vmem:[#allocation2 + $0xb0] sm:$0xff]
      %v327 = vld [vmem:[#allocation2 + $0xb8] sm:$0xff]
      %v328 = vld [vmem:[#allocation2 + $0xc0] sm:$0xff]
      %v329 = vld [vmem:[#allocation2 + $0xc8] sm:$0xff]
      %v330 = vld [vmem:[#allocation2 + $0xd0] sm:$0xff]
      %v331 = vld [vmem:[#allocation2 + $0xd8] sm:$0xff]
      %v332 = vld [vmem:[#allocation2 + $0xe0] sm:$0xff]
      %v333 = vld [vmem:[#allocation2 + $0xe8] sm:$0xff]
      %v334 = vld [vmem:[#allocation2 + $0xf0] sm:$0xff]
      %v335 = vld [vmem:[#allocation2 + $0xf8] sm:$0xff]
      %v336 = vld [vmem:[%s243] sm:$0xff]
      %v337 = vld [vmem:[%s243 + $0x8] sm:$0xf]
      %v338 = vld [vmem:[%s243 + $0xc] sm:$0xff]
      %v339 = vld [vmem:[%s243 + $0x14] sm:$0xf]
      %v340 = vld [vmem:[%s243 + $0x18] sm:$0xff]
      %v341 = vld [vmem:[%s243 + $0x20] sm:$0xf]
      %v342 = vld [vmem:[%s243 + $0x24] sm:$0xff]
      %v343 = vld [vmem:[%s243 + $0x2c] sm:$0xf]
      %v344 = vld [vmem:[%s243 + $0x30] sm:$0xff]
      %v345 = vld [vmem:[%s243 + $0x38] sm:$0xf]
      %v346 = vld [vmem:[%s243 + $0x3c] sm:$0xff]
      %v347 = vld [vmem:[%s243 + $0x44] sm:$0xf]
      %v348 = vld [vmem:[%s243 + $0x48] sm:$0xff]
      %v349 = vld [vmem:[%s243 + $0x50] sm:$0xf]
      %v350 = vld [vmem:[%s243 + $0x54] sm:$0xff]
      %v351 = vld [vmem:[%s243 + $0x5c] sm:$0xf]
      %v352 = vld [vmem:[%s243 + $0x60] sm:$0xff]
      %v353 = vld [vmem:[%s243 + $0x68] sm:$0xf]
      %v354 = vld [vmem:[%s243 + $0x6c] sm:$0xff]
      %v355 = vld [vmem:[%s243 + $0x74] sm:$0xf]
      %v356 = vld [vmem:[%s243 + $0x78] sm:$0xff]
      %v357 = vld [vmem:[%s243 + $0x80] sm:$0xf]
      %v358 = vld [vmem:[%s243 + $0x84] sm:$0xff]
      %v359 = vld [vmem:[%s243 + $0x8c] sm:$0xf]
      %v360 = vld [vmem:[%s243 + $0x90] sm:$0xff]
      %v361 = vld [vmem:[%s243 + $0x98] sm:$0xf]
      %v362 = vld [vmem:[%s243 + $0x9c] sm:$0xff]
      %v363 = vld [vmem:[%s243 + $0xa4] sm:$0xf]
      %v364 = vld [vmem:[%s243 + $0xa8] sm:$0xff]
      %v365 = vld [vmem:[%s243 + $0xb0] sm:$0xf]
      %v366 = vld [vmem:[%s243 + $0xb4] sm:$0xff]
      %v367 = vld [vmem:[%s243 + $0xbc] sm:$0xf]
      %v368 = vld [vmem:[%s243 + $0xc0] sm:$0xff]
      %v369 = vld [vmem:[%s243 + $0xc8] sm:$0xf]
      %v370 = vld [vmem:[%s243 + $0xcc] sm:$0xff]
      %v371 = vld [vmem:[%s243 + $0xd4] sm:$0xf]
      %v372 = vld [vmem:[%s243 + $0xd8] sm:$0xff]
      %v373 = vld [vmem:[%s243 + $0xe0] sm:$0xf]
      %v374 = vld [vmem:[%s243 + $0xe4] sm:$0xff]
      %v375 = vld [vmem:[%s243 + $0xec] sm:$0xf]
      %v376 = vld [vmem:[%s243 + $0xf0] sm:$0xff]
      %v377 = vld [vmem:[%s243 + $0xf8] sm:$0xf]
      %v378 = vld [vmem:[%s243 + $0xfc] sm:$0xff]
      %v379 = vld [vmem:[%s243 + $0x104] sm:$0xf]
      %v380 = vld [vmem:[%s243 + $0x108] sm:$0xff]
      %v381 = vld [vmem:[%s243 + $0x110] sm:$0xf]
      %v382 = vld [vmem:[%s243 + $0x114] sm:$0xff]
      %v383 = vld [vmem:[%s243 + $0x11c] sm:$0xf]
      %v384 = vld [vmem:[%s243 + $0x120] sm:$0xff]
      %v385 = vld [vmem:[%s243 + $0x128] sm:$0xf]
      %v386 = vld [vmem:[%s243 + $0x12c] sm:$0xff]
      %v387 = vld [vmem:[%s243 + $0x134] sm:$0xf]
      %v388 = vld [vmem:[%s243 + $0x138] sm:$0xff]
      %v389 = vld [vmem:[%s243 + $0x140] sm:$0xf]
      %v390 = vld [vmem:[%s243 + $0x144] sm:$0xff]
      %v391 = vld [vmem:[%s243 + $0x14c] sm:$0xf]
      %v392 = vld [vmem:[%s243 + $0x150] sm:$0xff]
      %v393 = vld [vmem:[%s243 + $0x158] sm:$0xf]
      %v394 = vld [vmem:[%s243 + $0x15c] sm:$0xff]
      %v395 = vld [vmem:[%s243 + $0x164] sm:$0xf]
      %v396 = vld [vmem:[%s243 + $0x168] sm:$0xff]
      %v397 = vld [vmem:[%s243 + $0x170] sm:$0xf]
      %v398 = vld [vmem:[%s243 + $0x174] sm:$0xff]
      %v399 = vld [vmem:[%s243 + $0x17c] sm:$0xf]
      %v400 = vld [vmem:[%s253] sm:$0xf]
      %v401 = vld [vmem:[%s253 + $0x4] sm:$0xf]
      %v402 = vld [vmem:[%s253 + $0x8] sm:$0xf]
      %v403 = vld [vmem:[%s253 + $0xc] sm:$0xf]
      %v404 = vld [vmem:[%s253 + $0x10] sm:$0xf]
      %v405 = vld [vmem:[%s253 + $0x14] sm:$0xf]
      %v406 = vld [vmem:[%s253 + $0x18] sm:$0xf]
      %v407 = vld [vmem:[%s253 + $0x1c] sm:$0xf]
      %v408 = vld [vmem:[%s253 + $0x20] sm:$0xf]
      %v409 = vld [vmem:[%s253 + $0x24] sm:$0xf]
      %v410 = vld [vmem:[%s253 + $0x28] sm:$0xf]
      %v411 = vld [vmem:[%s253 + $0x2c] sm:$0xf]
      %v412 = vld [vmem:[%s253 + $0x30] sm:$0xf]
      %v413 = vld [vmem:[%s253 + $0x34] sm:$0xf]
      %v414 = vld [vmem:[%s253 + $0x38] sm:$0xf]
      %v415 = vld [vmem:[%s253 + $0x3c] sm:$0xf]
      %v416 = vld [vmem:[%s253 + $0x40] sm:$0xf]
      %v417 = vld [vmem:[%s253 + $0x44] sm:$0xf]
      %v418 = vld [vmem:[%s253 + $0x48] sm:$0xf]
      %v419 = vld [vmem:[%s253 + $0x4c] sm:$0xf]
      %v420 = vld [vmem:[%s253 + $0x50] sm:$0xf]
      %v421 = vld [vmem:[%s253 + $0x54] sm:$0xf]
      %v422 = vld [vmem:[%s253 + $0x58] sm:$0xf]
      %v423 = vld [vmem:[%s253 + $0x5c] sm:$0xf]
      %v424 = vld [vmem:[%s253 + $0x60] sm:$0xf]
      %v425 = vld [vmem:[%s253 + $0x64] sm:$0xf]
      %v426 = vld [vmem:[%s253 + $0x68] sm:$0xf]
      %v427 = vld [vmem:[%s253 + $0x6c] sm:$0xf]
      %v428 = vld [vmem:[%s253 + $0x70] sm:$0xf]
      %v429 = vld [vmem:[%s253 + $0x74] sm:$0xf]
      %v430 = vld [vmem:[%s253 + $0x78] sm:$0xf]
      %v431 = vld [vmem:[%s253 + $0x7c] sm:$0xf]
      %v432 = vld [vmem:[%s253 + $0x80] sm:$0xf]
      %v433 = vld [vmem:[%s253 + $0x84] sm:$0xf]
      %v434 = vld [vmem:[%s253 + $0x88] sm:$0xf]
      %v435 = vld [vmem:[%s253 + $0x8c] sm:$0xf]
      %v436 = vld [vmem:[%s253 + $0x90] sm:$0xf]
      %v437 = vld [vmem:[%s253 + $0x94] sm:$0xf]
      %v438 = vld [vmem:[%s253 + $0x98] sm:$0xf]
      %v439 = vld [vmem:[%s253 + $0x9c] sm:$0xf]
      %v440 = vld [vmem:[%s253 + $0xa0] sm:$0xf]
      %v441 = vld [vmem:[%s253 + $0xa4] sm:$0xf]
      %v442 = vld [vmem:[%s253 + $0xa8] sm:$0xf]
      %v443 = vld [vmem:[%s253 + $0xac] sm:$0xf]
      %v444 = vld [vmem:[%s253 + $0xb0] sm:$0xf]
      %v445 = vld [vmem:[%s253 + $0xb4] sm:$0xf]
      %v446 = vld [vmem:[%s253 + $0xb8] sm:$0xf]
      %v447 = vld [vmem:[%s253 + $0xbc] sm:$0xf]
      %v512 = vunpack.c.l.b16 %v336
      %v513 = vunpack.c.h.b16 %v336
      %v514 = vunpack.c.l.b16 %v337
      %v515 = vunpack.c.l.b16 %v338
      %v516 = vunpack.c.h.b16 %v338
      %v517 = vunpack.c.l.b16 %v339
      %v518 = vunpack.c.l.b16 %v340
      %v519 = vunpack.c.h.b16 %v340
      %v520 = vunpack.c.l.b16 %v341
      %v521 = vunpack.c.l.b16 %v342
      %v522 = vunpack.c.h.b16 %v342
      %v523 = vunpack.c.l.b16 %v343
      %v524 = vunpack.c.l.b16 %v344
      %v525 = vunpack.c.h.b16 %v344
      %v526 = vunpack.c.l.b16 %v345
      %v527 = vunpack.c.l.b16 %v346
      %v528 = vunpack.c.h.b16 %v346
      %v529 = vunpack.c.l.b16 %v347
      %v530 = vunpack.c.l.b16 %v348
      %v531 = vunpack.c.h.b16 %v348
      %v532 = vunpack.c.l.b16 %v349
      %v533 = vunpack.c.l.b16 %v350
      %v534 = vunpack.c.h.b16 %v350
      %v535 = vunpack.c.l.b16 %v351
      %v536 = vunpack.c.l.b16 %v352
      %v537 = vunpack.c.h.b16 %v352
      %v538 = vunpack.c.l.b16 %v353
      %v539 = vunpack.c.l.b16 %v354
      %v540 = vunpack.c.h.b16 %v354
      %v541 = vunpack.c.l.b16 %v355
      %v542 = vunpack.c.l.b16 %v356
      %v543 = vunpack.c.h.b16 %v356
      %v544 = vunpack.c.l.b16 %v357
      %v545 = vunpack.c.l.b16 %v358
      %v546 = vunpack.c.h.b16 %v358
      %v547 = vunpack.c.l.b16 %v359
      %v548 = vunpack.c.l.b16 %v360
      %v549 = vunpack.c.h.b16 %v360
      %v550 = vunpack.c.l.b16 %v361
      %v551 = vunpack.c.l.b16 %v362
      %v552 = vunpack.c.h.b16 %v362
      %v553 = vunpack.c.l.b16 %v363
      %v554 = vunpack.c.l.b16 %v364
      %v555 = vunpack.c.h.b16 %v364
      %v556 = vunpack.c.l.b16 %v365
      %v557 = vunpack.c.l.b16 %v366
      %v558 = vunpack.c.h.b16 %v366
      %v559 = vunpack.c.l.b16 %v367
      %v560 = vunpack.c.l.b16 %v368
      %v561 = vunpack.c.h.b16 %v368
      %v562 = vunpack.c.l.b16 %v369
      %v563 = vunpack.c.l.b16 %v370
      %v564 = vunpack.c.h.b16 %v370
      %v565 = vunpack.c.l.b16 %v371
      %v566 = vunpack.c.l.b16 %v372
      %v567 = vunpack.c.h.b16 %v372
      %v568 = vunpack.c.l.b16 %v373
      %v569 = vunpack.c.l.b16 %v374
      %v570 = vunpack.c.h.b16 %v374
      %v571 = vunpack.c.l.b16 %v375
      %v572 = vunpack.c.l.b16 %v376
      %v573 = vunpack.c.h.b16 %v376
      %v574 = vunpack.c.l.b16 %v377
      %v575 = vunpack.c.l.b16 %v378
      %v576 = vunpack.c.h.b16 %v378
      %v577 = vunpack.c.l.b16 %v379
      %v578 = vunpack.c.l.b16 %v380
      %v579 = vunpack.c.h.b16 %v380
      %v580 = vunpack.c.l.b16 %v381
      %v581 = vunpack.c.l.b16 %v382
      %v582 = vunpack.c.h.b16 %v382
      %v583 = vunpack.c.l.b16 %v383
      %v584 = vunpack.c.l.b16 %v384
      %v585 = vunpack.c.h.b16 %v384
      %v586 = vunpack.c.l.b16 %v385
      %v587 = vunpack.c.l.b16 %v386
      %v588 = vunpack.c.h.b16 %v386
      %v589 = vunpack.c.l.b16 %v387
      %v590 = vunpack.c.l.b16 %v388
      %v591 = vunpack.c.h.b16 %v388
      %v592 = vunpack.c.l.b16 %v389
      %v593 = vunpack.c.l.b16 %v390
      %v594 = vunpack.c.h.b16 %v390
      %v595 = vunpack.c.l.b16 %v391
      %v596 = vunpack.c.l.b16 %v392
      %v597 = vunpack.c.h.b16 %v392
      %v598 = vunpack.c.l.b16 %v393
      %v599 = vunpack.c.l.b16 %v394
      %v600 = vunpack.c.h.b16 %v394
      %v601 = vunpack.c.l.b16 %v395
      %v602 = vunpack.c.l.b16 %v396
      %v603 = vunpack.c.h.b16 %v396
      %v604 = vunpack.c.l.b16 %v397
      %v605 = vunpack.c.l.b16 %v398
      %v606 = vunpack.c.h.b16 %v398
      %v607 = vunpack.c.l.b16 %v399
      %v608 = vpack.c.b16 %v515, %v512
      %v609 = vpack.c.b16 %v516, %v513
      %v610 = vpack.c.b16 %v517, %v514
      %v611 = vpack.c.b16 %v521, %v518
      %v612 = vpack.c.b16 %v522, %v519
      %v613 = vpack.c.b16 %v523, %v520
      %v614 = vpack.c.b16 %v527, %v524
      %v615 = vpack.c.b16 %v528, %v525
      %v616 = vpack.c.b16 %v529, %v526
      %v617 = vpack.c.b16 %v533, %v530
      %v618 = vpack.c.b16 %v534, %v531
      %v619 = vpack.c.b16 %v535, %v532
      %v620 = vpack.c.b16 %v539, %v536
      %v621 = vpack.c.b16 %v540, %v537
      %v622 = vpack.c.b16 %v541, %v538
      %v623 = vpack.c.b16 %v545, %v542
      %v624 = vpack.c.b16 %v546, %v543
      %v625 = vpack.c.b16 %v547, %v544
      %v626 = vpack.c.b16 %v551, %v548
      %v627 = vpack.c.b16 %v552, %v549
      %v628 = vpack.c.b16 %v553, %v550
      %v629 = vpack.c.b16 %v557, %v554
      %v630 = vpack.c.b16 %v558, %v555
      %v631 = vpack.c.b16 %v559, %v556
      %v632 = vpack.c.b16 %v563, %v560
      %v633 = vpack.c.b16 %v564, %v561
      %v634 = vpack.c.b16 %v565, %v562
      %v635 = vpack.c.b16 %v569, %v566
      %v636 = vpack.c.b16 %v570, %v567
      %v637 = vpack.c.b16 %v571, %v568
      %v638 = vpack.c.b16 %v575, %v572
      %v639 = vpack.c.b16 %v576, %v573
      %v640 = vpack.c.b16 %v577, %v574
      %v641 = vpack.c.b16 %v581, %v578
      %v642 = vpack.c.b16 %v582, %v579
      %v643 = vpack.c.b16 %v583, %v580
      %v644 = vpack.c.b16 %v587, %v584
      %v645 = vpack.c.b16 %v588, %v585
      %v646 = vpack.c.b16 %v589, %v586
      %v647 = vpack.c.b16 %v593, %v590
      %v648 = vpack.c.b16 %v594, %v591
      %v649 = vpack.c.b16 %v595, %v592
      %v650 = vpack.c.b16 %v599, %v596
      %v651 = vpack.c.b16 %v600, %v597
      %v652 = vpack.c.b16 %v601, %v598
      %v653 = vpack.c.b16 %v605, %v602
      %v654 = vpack.c.b16 %v606, %v603
      %v655 = vpack.c.b16 %v607, %v604
      %v752 = vunpack.c.l.b16 %v400
      %v753 = vunpack.c.l.b16 %v401
      %v754 = vunpack.c.l.b16 %v402
      %v755 = vunpack.c.l.b16 %v403
      %v756 = vunpack.c.l.b16 %v404
      %v757 = vunpack.c.l.b16 %v405
      %v758 = vunpack.c.l.b16 %v406
      %v759 = vunpack.c.l.b16 %v407
      %v760 = vunpack.c.l.b16 %v408
      %v761 = vunpack.c.l.b16 %v409
      %v762 = vunpack.c.l.b16 %v410
      %v763 = vunpack.c.l.b16 %v411
      %v764 = vunpack.c.l.b16 %v412
      %v765 = vunpack.c.l.b16 %v413
      %v766 = vunpack.c.l.b16 %v414
      %v767 = vunpack.c.l.b16 %v415
      %v768 = vunpack.c.l.b16 %v416
      %v769 = vunpack.c.l.b16 %v417
      %v770 = vunpack.c.l.b16 %v418
      %v771 = vunpack.c.l.b16 %v419
      %v772 = vunpack.c.l.b16 %v420
      %v773 = vunpack.c.l.b16 %v421
      %v774 = vunpack.c.l.b16 %v422
      %v775 = vunpack.c.l.b16 %v423
      %v776 = vunpack.c.l.b16 %v424
      %v777 = vunpack.c.l.b16 %v425
      %v778 = vunpack.c.l.b16 %v426
      %v779 = vunpack.c.l.b16 %v427
      %v780 = vunpack.c.l.b16 %v428
      %v781 = vunpack.c.l.b16 %v429
      %v782 = vunpack.c.l.b16 %v430
      %v783 = vunpack.c.l.b16 %v431
      %v784 = vunpack.c.l.b16 %v432
      %v785 = vunpack.c.l.b16 %v433
      %v786 = vunpack.c.l.b16 %v434
      %v787 = vunpack.c.l.b16 %v435
      %v788 = vunpack.c.l.b16 %v436
      %v789 = vunpack.c.l.b16 %v437
      %v790 = vunpack.c.l.b16 %v438
      %v791 = vunpack.c.l.b16 %v439
      %v792 = vunpack.c.l.b16 %v440
      %v793 = vunpack.c.l.b16 %v441
      %v794 = vunpack.c.l.b16 %v442
      %v795 = vunpack.c.l.b16 %v443
      %v796 = vunpack.c.l.b16 %v444
      %v797 = vunpack.c.l.b16 %v445
      %v798 = vunpack.c.l.b16 %v446
      %v799 = vunpack.c.l.b16 %v447
      %v800 = vpack.c.b16 %v753, %v752
      %v801 = vpack.c.b16 %v755, %v754
      %v802 = vpack.c.b16 %v757, %v756
      %v803 = vpack.c.b16 %v759, %v758
      %v804 = vpack.c.b16 %v761, %v760
      %v805 = vpack.c.b16 %v763, %v762
      %v806 = vpack.c.b16 %v765, %v764
      %v807 = vpack.c.b16 %v767, %v766
      %v808 = vpack.c.b16 %v769, %v768
      %v809 = vpack.c.b16 %v771, %v770
      %v810 = vpack.c.b16 %v773, %v772
      %v811 = vpack.c.b16 %v775, %v774
      %v812 = vpack.c.b16 %v777, %v776
      %v813 = vpack.c.b16 %v779, %v778
      %v814 = vpack.c.b16 %v781, %v780
      %v815 = vpack.c.b16 %v783, %v782
      %v816 = vpack.c.b16 %v785, %v784
      %v817 = vpack.c.b16 %v787, %v786
      %v818 = vpack.c.b16 %v789, %v788
      %v819 = vpack.c.b16 %v791, %v790
      %v820 = vpack.c.b16 %v793, %v792
      %v821 = vpack.c.b16 %v795, %v794
      %v822 = vpack.c.b16 %v797, %v796
      %v823 = vpack.c.b16 %v799, %v798
      %848 = vmatprep.subr.bf16.mxu0 0
      %849 = vmatpush1.bf16.msra.mxu0 %v800
      %850 = vmatprep.subr.bf16.mxu0 0
      %851 = vmatpush1.bf16.msra.mxu0 %v801
      %852 = vmatprep.subr.bf16.mxu0 0
      %853 = vmatpush1.bf16.msra.mxu0 %v802
      %854 = vmatprep.subr.bf16.mxu0 0
      %855 = vmatpush1.bf16.msra.mxu0 %v803
      %856 = vmatprep.subr.bf16.mxu0 0
      %857 = vmatpush1.bf16.msra.mxu0 %v804
      %858 = vmatprep.subr.bf16.mxu0 0
      %859 = vmatpush1.bf16.msra.mxu0 %v805
      %860 = vmatprep.subr.bf16.mxu0 0
      %861 = vmatpush1.bf16.msra.mxu0 %v806
      %862 = vmatprep.subr.bf16.mxu0 0
      %863 = vmatpush1.bf16.msra.mxu0 %v807
      %864 = vmatprep.subr.bf16.mxu0 0
      %865 = vmatpush1.bf16.msra.mxu0 %v808
      %866 = vmatprep.subr.bf16.mxu0 0
      %867 = vmatpush1.bf16.msra.mxu0 %v809
      %868 = vmatprep.subr.bf16.mxu0 0
      %869 = vmatpush1.bf16.msra.mxu0 %v810
      %870 = vmatprep.subr.bf16.mxu0 0
      %871 = vmatpush1.bf16.msra.mxu0 %v811
      %872 = vmatprep.subr.bf16.mxu0 0
      %873 = vmatpush1.bf16.msra.mxu0 %v812
      %874 = vmatprep.subr.bf16.mxu0 0
      %875 = vmatpush1.bf16.msra.mxu0 %v813
      %876 = vmatprep.subr.bf16.mxu0 0
      %877 = vmatpush1.bf16.msra.mxu0 %v814
      %878 = vmatprep.subr.bf16.mxu0 0
      %879 = vmatpush1.bf16.msra.mxu0 %v815
      %880 = vmatprep.mubr.bf16.mxu0 %v609
      %881 = vmatmul.mubr.bf16.gmra.mrb[0].mxu0 %v608
      %v882 = vpop.f32.mrb[0].mxu0
      %v883 = vadd.f32 0.0, %v882
      %v884 = vpop.f32.mrb[0].mxu0
      %v885 = vpop.f32.mrb[0].mxu0
      %v886 = vadd.f32 0.0, %v885
      %v887 = vpop.f32.mrb[0].mxu0
      %888 = vmatprep.mubr.bf16.mxu0 %v612
      %889 = vmatmul.mubr.bf16.gmra.mrb[0].mxu0 %v611
      %v890 = vpop.f32.mrb[0].mxu0
      %v891 = vadd.f32 0.0, %v890
      %v892 = vpop.f32.mrb[0].mxu0
      %v893 = vpop.f32.mrb[0].mxu0
      %v894 = vadd.f32 0.0, %v893
      %v895 = vpop.f32.mrb[0].mxu0
      %896 = vmatprep.mubr.bf16.mxu0 %v615
      %897 = vmatmul.mubr.bf16.gmra.mrb[0].mxu0 %v614
      %v898 = vpop.f32.mrb[0].mxu0
      %v899 = vadd.f32 0.0, %v898
      %v900 = vpop.f32.mrb[0].mxu0
      %v901 = vpop.f32.mrb[0].mxu0
      %v902 = vadd.f32 0.0, %v901
      %v903 = vpop.f32.mrb[0].mxu0
      %904 = vmatprep.mubr.bf16.mxu0 %v618
      %905 = vmatmul.mubr.bf16.gmra.mrb[0].mxu0 %v617
      %v906 = vpop.f32.mrb[0].mxu0
      %v907 = vadd.f32 0.0, %v906
      %v908 = vpop.f32.mrb[0].mxu0
      %v909 = vpop.f32.mrb[0].mxu0
      %v910 = vadd.f32 0.0, %v909
      %v911 = vpop.f32.mrb[0].mxu0
      %912 = vmatprep.mubr.bf16.mxu0 %v621
      %913 = vmatmul.mubr.bf16.gmra.mrb[0].mxu0 %v620
      %v914 = vpop.f32.mrb[0].mxu0
      %v915 = vadd.f32 0.0, %v914
      %v916 = vpop.f32.mrb[0].mxu0
      %v917 = vpop.f32.mrb[0].mxu0
      %v918 = vadd.f32 0.0, %v917
      %v919 = vpop.f32.mrb[0].mxu0
      %920 = vmatprep.mubr.bf16.mxu0 %v624
      %921 = vmatmul.mubr.bf16.gmra.mrb[0].mxu0 %v623
      %v922 = vpop.f32.mrb[0].mxu0
      %v923 = vadd.f32 0.0, %v922
      %v924 = vpop.f32.mrb[0].mxu0
      %v925 = vpop.f32.mrb[0].mxu0
      %v926 = vadd.f32 0.0, %v925
      %v927 = vpop.f32.mrb[0].mxu0
      %928 = vmatprep.mubr.bf16.mxu0 %v627
      %929 = vmatmul.mubr.bf16.gmra.mrb[0].mxu0 %v626
      %v930 = vpop.f32.mrb[0].mxu0
      %v931 = vadd.f32 0.0, %v930
      %v932 = vpop.f32.mrb[0].mxu0
      %v933 = vpop.f32.mrb[0].mxu0
      %v934 = vadd.f32 0.0, %v933
      %v935 = vpop.f32.mrb[0].mxu0
      %936 = vmatprep.mubr.bf16.mxu0 %v630
      %937 = vmatmul.mubr.bf16.gmra.mrb[0].mxu0 %v629
      %v938 = vpop.f32.mrb[0].mxu0
      %v939 = vadd.f32 0.0, %v938
      %v940 = vpop.f32.mrb[0].mxu0
      %v941 = vpop.f32.mrb[0].mxu0
      %v942 = vadd.f32 0.0, %v941
      %v943 = vpop.f32.mrb[0].mxu0
      %944 = vmatprep.mubr.bf16.mxu0 %v633
      %945 = vmatmul.mubr.bf16.gmra.mrb[0].mxu0 %v632
      %v946 = vpop.f32.mrb[0].mxu0
      %v947 = vadd.f32 0.0, %v946
      %v948 = vpop.f32.mrb[0].mxu0
      %v949 = vpop.f32.mrb[0].mxu0
      %v950 = vadd.f32 0.0, %v949
      %v951 = vpop.f32.mrb[0].mxu0
      %952 = vmatprep.mubr.bf16.mxu0 %v636
      %953 = vmatmul.mubr.bf16.gmra.mrb[0].mxu0 %v635
      %v954 = vpop.f32.mrb[0].mxu0
      %v955 = vadd.f32 0.0, %v954
      %v956 = vpop.f32.mrb[0].mxu0
      %v957 = vpop.f32.mrb[0].mxu0
      %v958 = vadd.f32 0.0, %v957
      %v959 = vpop.f32.mrb[0].mxu0
      %960 = vmatprep.mubr.bf16.mxu0 %v639
      %961 = vmatmul.mubr.bf16.gmra.mrb[0].mxu0 %v638
      %v962 = vpop.f32.mrb[0].mxu0
      %v963 = vadd.f32 0.0, %v962
      %v964 = vpop.f32.mrb[0].mxu0
      %v965 = vpop.f32.mrb[0].mxu0
      %v966 = vadd.f32 0.0, %v965
      %v967 = vpop.f32.mrb[0].mxu0
      %968 = vmatprep.mubr.bf16.mxu0 %v642
      %969 = vmatmul.mubr.bf16.gmra.mrb[0].mxu0 %v641
      %v970 = vpop.f32.mrb[0].mxu0
      %v971 = vadd.f32 0.0, %v970
      %v972 = vpop.f32.mrb[0].mxu0
      %v973 = vpop.f32.mrb[0].mxu0
      %v974 = vadd.f32 0.0, %v973
      %v975 = vpop.f32.mrb[0].mxu0
      %976 = vmatprep.mubr.bf16.mxu0 %v645
      %977 = vmatmul.mubr.bf16.gmra.mrb[0].mxu0 %v644
      %v978 = vpop.f32.mrb[0].mxu0
      %v979 = vadd.f32 0.0, %v978
      %v980 = vpop.f32.mrb[0].mxu0
      %v981 = vpop.f32.mrb[0].mxu0
      %v982 = vadd.f32 0.0, %v981
      %v983 = vpop.f32.mrb[0].mxu0
      %984 = vmatprep.mubr.bf16.mxu0 %v648
      %985 = vmatmul.mubr.bf16.gmra.mrb[0].mxu0 %v647
      %v986 = vpop.f32.mrb[0].mxu0
      %v987 = vadd.f32 0.0, %v986
      %v988 = vpop.f32.mrb[0].mxu0
      %v989 = vpop.f32.mrb[0].mxu0
      %v990 = vadd.f32 0.0, %v989
      %v991 = vpop.f32.mrb[0].mxu0
      %992 = vmatprep.mubr.bf16.mxu0 %v651
      %993 = vmatmul.mubr.bf16.gmra.mrb[0].mxu0 %v650
      %v994 = vpop.f32.mrb[0].mxu0
      %v995 = vadd.f32 0.0, %v994
      %v996 = vpop.f32.mrb[0].mxu0
      %v997 = vpop.f32.mrb[0].mxu0
      %v998 = vadd.f32 0.0, %v997
      %v999 = vpop.f32.mrb[0].mxu0
      %1000 = vmatprep.mubr.bf16.mxu0 %v654
      %1001 = vmatmul.mubr.bf16.gmra.mrb[0].mxu0 %v653
      %v1002 = vpop.f32.mrb[0].mxu0
      %v1003 = vadd.f32 0.0, %v1002
      %v1004 = vpop.f32.mrb[0].mxu0
      %v1005 = vpop.f32.mrb[0].mxu0
      %v1006 = vadd.f32 0.0, %v1005
      %v1007 = vpop.f32.mrb[0].mxu0
      %1008 = vdwg.mxu0
      %1009 = vmatprep.subr.bf16.mxu0 0
      %1010 = vmatpush1.bf16.msra.mxu0 %v816
      %1011 = vmatprep.subr.bf16.mxu0 0
      %1012 = vmatpush1.bf16.msra.mxu0 %v817
      %1013 = vmatprep.subr.bf16.mxu0 0
      %1014 = vmatpush1.bf16.msra.mxu0 %v818
      %1015 = vmatprep.subr.bf16.mxu0 0
      %1016 = vmatpush1.bf16.msra.mxu0 %v819
      %1017 = vmatprep.subr.bf16.mxu0 0
      %1018 = vmatpush1.bf16.msra.mxu0 %v820
      %1019 = vmatprep.subr.bf16.mxu0 0
      %1020 = vmatpush1.bf16.msra.mxu0 %v821
      %1021 = vmatprep.subr.bf16.mxu0 0
      %1022 = vmatpush1.bf16.msra.mxu0 %v822
      %1023 = vmatprep.subr.bf16.mxu0 0
      %1024 = vmatpush1.bf16.msra.mxu0 %v823
      %1025 = vmatprep.subr.bf16.mxu0 0
      %1026 = vmatpush1.bf16.msra.mxu0 0
      %1027 = vmatprep.subr.bf16.mxu0 0
      %1028 = vmatpush1.bf16.msra.mxu0 0
      %1029 = vmatprep.subr.bf16.mxu0 0
      %1030 = vmatpush1.bf16.msra.mxu0 0
      %1031 = vmatprep.subr.bf16.mxu0 0
      %1032 = vmatpush1.bf16.msra.mxu0 0
      %1033 = vmatprep.subr.bf16.mxu0 0
      %1034 = vmatpush1.bf16.msra.mxu0 0
      %1035 = vmatprep.subr.bf16.mxu0 0
      %1036 = vmatpush1.bf16.msra.mxu0 0
      %1037 = vmatprep.subr.bf16.mxu0 0
      %1038 = vmatpush1.bf16.msra.mxu0 0
      %1039 = vmatprep.subr.bf16.mxu0 0
      %1040 = vmatpush1.bf16.msra.mxu0 0
      %1041 = vmatprep.mubr.bf16.mxu0 0
      %1042 = vmatmul.mubr.bf16.gmra.mrb[0].mxu0 %v610
      %v1043 = vpop.f32.mrb[0].mxu0
      %v1044 = vadd.f32 %v883, %v1043
      %v1045 = vpop.f32.mrb[0].mxu0
      %v1046 = vpop.f32.mrb[0].mxu0
      %v1047 = vadd.f32 %v886, %v1046
      %v1048 = vpop.f32.mrb[0].mxu0
      %1049 = vmatprep.mubr.bf16.mxu0 0
      %1050 = vmatmul.mubr.bf16.gmra.mrb[0].mxu0 %v613
      %v1051 = vpop.f32.mrb[0].mxu0
      %v1052 = vadd.f32 %v891, %v1051
      %v1053 = vpop.f32.mrb[0].mxu0
      %v1054 = vpop.f32.mrb[0].mxu0
      %v1055 = vadd.f32 %v894, %v1054
      %v1056 = vpop.f32.mrb[0].mxu0
      %1057 = vmatprep.mubr.bf16.mxu0 0
      %1058 = vmatmul.mubr.bf16.gmra.mrb[0].mxu0 %v616
      %v1059 = vpop.f32.mrb[0].mxu0
      %v1060 = vadd.f32 %v899, %v1059
      %v1061 = vpop.f32.mrb[0].mxu0
      %v1062 = vpop.f32.mrb[0].mxu0
      %v1063 = vadd.f32 %v902, %v1062
      %v1064 = vpop.f32.mrb[0].mxu0
      %1065 = vmatprep.mubr.bf16.mxu0 0
      %1066 = vmatmul.mubr.bf16.gmra.mrb[0].mxu0 %v619
      %v1067 = vpop.f32.mrb[0].mxu0
      %v1068 = vadd.f32 %v907, %v1067
      %v1069 = vpop.f32.mrb[0].mxu0
      %v1070 = vpop.f32.mrb[0].mxu0
      %v1071 = vadd.f32 %v910, %v1070
      %v1072 = vpop.f32.mrb[0].mxu0
      %1073 = vmatprep.mubr.bf16.mxu0 0
      %1074 = vmatmul.mubr.bf16.gmra.mrb[0].mxu0 %v622
      %v1075 = vpop.f32.mrb[0].mxu0
      %v1076 = vadd.f32 %v915, %v1075
      %v1077 = vpop.f32.mrb[0].mxu0
      %v1078 = vpop.f32.mrb[0].mxu0
      %v1079 = vadd.f32 %v918, %v1078
      %v1080 = vpop.f32.mrb[0].mxu0
      %1081 = vmatprep.mubr.bf16.mxu0 0
      %1082 = vmatmul.mubr.bf16.gmra.mrb[0].mxu0 %v625
      %v1083 = vpop.f32.mrb[0].mxu0
      %v1084 = vadd.f32 %v923, %v1083
      %v1085 = vpop.f32.mrb[0].mxu0
      %v1086 = vpop.f32.mrb[0].mxu0
      %v1087 = vadd.f32 %v926, %v1086
      %v1088 = vpop.f32.mrb[0].mxu0
      %1089 = vmatprep.mubr.bf16.mxu0 0
      %1090 = vmatmul.mubr.bf16.gmra.mrb[0].mxu0 %v628
      %v1091 = vpop.f32.mrb[0].mxu0
      %v1092 = vadd.f32 %v931, %v1091
      %v1093 = vpop.f32.mrb[0].mxu0
      %v1094 = vpop.f32.mrb[0].mxu0
      %v1095 = vadd.f32 %v934, %v1094
      %v1096 = vpop.f32.mrb[0].mxu0
      %1097 = vmatprep.mubr.bf16.mxu0 0
      %1098 = vmatmul.mubr.bf16.gmra.mrb[0].mxu0 %v631
      %v1099 = vpop.f32.mrb[0].mxu0
      %v1100 = vadd.f32 %v939, %v1099
      %v1101 = vpop.f32.mrb[0].mxu0
      %v1102 = vpop.f32.mrb[0].mxu0
      %v1103 = vadd.f32 %v942, %v1102
      %v1104 = vpop.f32.mrb[0].mxu0
      %1105 = vmatprep.mubr.bf16.mxu0 0
      %1106 = vmatmul.mubr.bf16.gmra.mrb[0].mxu0 %v634
      %v1107 = vpop.f32.mrb[0].mxu0
      %v1108 = vadd.f32 %v947, %v1107
      %v1109 = vpop.f32.mrb[0].mxu0
      %v1110 = vpop.f32.mrb[0].mxu0
      %v1111 = vadd.f32 %v950, %v1110
      %v1112 = vpop.f32.mrb[0].mxu0
      %1113 = vmatprep.mubr.bf16.mxu0 0
      %1114 = vmatmul.mubr.bf16.gmra.mrb[0].mxu0 %v637
      %v1115 = vpop.f32.mrb[0].mxu0
      %v1116 = vadd.f32 %v955, %v1115
      %v1117 = vpop.f32.mrb[0].mxu0
      %v1118 = vpop.f32.mrb[0].mxu0
      %v1119 = vadd.f32 %v958, %v1118
      %v1120 = vpop.f32.mrb[0].mxu0
      %1121 = vmatprep.mubr.bf16.mxu0 0
      %1122 = vmatmul.mubr.bf16.gmra.mrb[0].mxu0 %v640
      %v1123 = vpop.f32.mrb[0].mxu0
      %v1124 = vadd.f32 %v963, %v1123
      %v1125 = vpop.f32.mrb[0].mxu0
      %v1126 = vpop.f32.mrb[0].mxu0
      %v1127 = vadd.f32 %v966, %v1126
      %v1128 = vpop.f32.mrb[0].mxu0
      %1129 = vmatprep.mubr.bf16.mxu0 0
      %1130 = vmatmul.mubr.bf16.gmra.mrb[0].mxu0 %v643
      %v1131 = vpop.f32.mrb[0].mxu0
      %v1132 = vadd.f32 %v971, %v1131
      %v1133 = vpop.f32.mrb[0].mxu0
      %v1134 = vpop.f32.mrb[0].mxu0
      %v1135 = vadd.f32 %v974, %v1134
      %v1136 = vpop.f32.mrb[0].mxu0
      %1137 = vmatprep.mubr.bf16.mxu0 0
      %1138 = vmatmul.mubr.bf16.gmra.mrb[0].mxu0 %v646
      %v1139 = vpop.f32.mrb[0].mxu0
      %v1140 = vadd.f32 %v979, %v1139
      %v1141 = vpop.f32.mrb[0].mxu0
      %v1142 = vpop.f32.mrb[0].mxu0
      %v1143 = vadd.f32 %v982, %v1142
      %v1144 = vpop.f32.mrb[0].mxu0
      %1145 = vmatprep.mubr.bf16.mxu0 0
      %1146 = vmatmul.mubr.bf16.gmra.mrb[0].mxu0 %v649
      %v1147 = vpop.f32.mrb[0].mxu0
      %v1148 = vadd.f32 %v987, %v1147
      %v1149 = vpop.f32.mrb[0].mxu0
      %v1150 = vpop.f32.mrb[0].mxu0
      %v1151 = vadd.f32 %v990, %v1150
      %v1152 = vpop.f32.mrb[0].mxu0
      %1153 = vmatprep.mubr.bf16.mxu0 0
      %1154 = vmatmul.mubr.bf16.gmra.mrb[0].mxu0 %v652
      %v1155 = vpop.f32.mrb[0].mxu0
      %v1156 = vadd.f32 %v995, %v1155
      %v1157 = vpop.f32.mrb[0].mxu0
      %v1158 = vpop.f32.mrb[0].mxu0
      %v1159 = vadd.f32 %v998, %v1158
      %v1160 = vpop.f32.mrb[0].mxu0
      %1161 = vmatprep.mubr.bf16.mxu0 0
      %1162 = vmatmul.mubr.bf16.gmra.mrb[0].mxu0 %v655
      %v1163 = vpop.f32.mrb[0].mxu0
      %v1164 = vadd.f32 %v1003, %v1163
      %v1165 = vpop.f32.mrb[0].mxu0
      %v1166 = vpop.f32.mrb[0].mxu0
      %v1167 = vadd.f32 %v1006, %v1166
      %v1168 = vpop.f32.mrb[0].mxu0
      %1169 = vdwg.mxu0
      %v1170 = vadd.f32 %v304, %v1044
      %v1171 = vadd.f32 %v305, %v1047
      %v1172 = vadd.f32 %v306, %v1052
      %v1173 = vadd.f32 %v307, %v1055
      %v1174 = vadd.f32 %v308, %v1060
      %v1175 = vadd.f32 %v309, %v1063
      %v1176 = vadd.f32 %v310, %v1068
      %v1177 = vadd.f32 %v311, %v1071
      %v1178 = vadd.f32 %v312, %v1076
      %v1179 = vadd.f32 %v313, %v1079
      %v1180 = vadd.f32 %v314, %v1084
      %v1181 = vadd.f32 %v315, %v1087
      %v1182 = vadd.f32 %v316, %v1092
      %v1183 = vadd.f32 %v317, %v1095
      %v1184 = vadd.f32 %v318, %v1100
      %v1185 = vadd.f32 %v319, %v1103
      %v1186 = vadd.f32 %v320, %v1108
      %v1187 = vadd.f32 %v321, %v1111
      %v1188 = vadd.f32 %v322, %v1116
      %v1189 = vadd.f32 %v323, %v1119
      %v1190 = vadd.f32 %v324, %v1124
      %v1191 = vadd.f32 %v325, %v1127
      %v1192 = vadd.f32 %v326, %v1132
      %v1193 = vadd.f32 %v327, %v1135
      %v1194 = vadd.f32 %v328, %v1140
      %v1195 = vadd.f32 %v329, %v1143
      %v1196 = vadd.f32 %v330, %v1148
      %v1197 = vadd.f32 %v331, %v1151
      %v1198 = vadd.f32 %v332, %v1156
      %v1199 = vadd.f32 %v333, %v1159
      %v1200 = vadd.f32 %v334, %v1164
      %v1201 = vadd.f32 %v335, %v1167
      %1202 = vst [vmem:[#allocation2] sm:$0xff] %v1170
      %1203 = vst [vmem:[#allocation2 + $0x8] sm:$0xff] %v1171
      %1204 = vst [vmem:[#allocation2 + $0x10] sm:$0xff] %v1172
      %1205 = vst [vmem:[#allocation2 + $0x18] sm:$0xff] %v1173
      %1206 = vst [vmem:[#allocation2 + $0x20] sm:$0xff] %v1174
      %1207 = vst [vmem:[#allocation2 + $0x28] sm:$0xff] %v1175
      %1208 = vst [vmem:[#allocation2 + $0x30] sm:$0xff] %v1176
      %1209 = vst [vmem:[#allocation2 + $0x38] sm:$0xff] %v1177
      %1210 = vst [vmem:[#allocation2 + $0x40] sm:$0xff] %v1178
      %1211 = vst [vmem:[#allocation2 + $0x48] sm:$0xff] %v1179
      %1212 = vst [vmem:[#allocation2 + $0x50] sm:$0xff] %v1180
      %1213 = vst [vmem:[#allocation2 + $0x58] sm:$0xff] %v1181
      %1214 = vst [vmem:[#allocation2 + $0x60] sm:$0xff] %v1182
      %1215 = vst [vmem:[#allocation2 + $0x68] sm:$0xff] %v1183
      %1216 = vst [vmem:[#allocation2 + $0x70] sm:$0xff] %v1184
      %1217 = vst [vmem:[#allocation2 + $0x78] sm:$0xff] %v1185
      %1218 = vst [vmem:[#allocation2 + $0x80] sm:$0xff] %v1186
      %1219 = vst [vmem:[#allocation2 + $0x88] sm:$0xff] %v1187
      %1220 = vst [vmem:[#allocation2 + $0x90] sm:$0xff] %v1188
      %1221 = vst [vmem:[#allocation2 + $0x98] sm:$0xff] %v1189
      %1222 = vst [vmem:[#allocation2 + $0xa0] sm:$0xff] %v1190
      %1223 = vst [vmem:[#allocation2 + $0xa8] sm:$0xff] %v1191
      %1224 = vst [vmem:[#allocation2 + $0xb0] sm:$0xff] %v1192
      %1225 = vst [vmem:[#allocation2 + $0xb8] sm:$0xff] %v1193
      %1226 = vst [vmem:[#allocation2 + $0xc0] sm:$0xff] %v1194
      %1227 = vst [vmem:[#allocation2 + $0xc8] sm:$0xff] %v1195
      %1228 = vst [vmem:[#allocation2 + $0xd0] sm:$0xff] %v1196
      %1229 = vst [vmem:[#allocation2 + $0xd8] sm:$0xff] %v1197
      %1230 = vst [vmem:[#allocation2 + $0xe0] sm:$0xff] %v1198
      %1231 = vst [vmem:[#allocation2 + $0xe8] sm:$0xff] %v1199
      %1232 = vst [vmem:[#allocation2 + $0xf0] sm:$0xff] %v1200
      %1233 = vst [vmem:[#allocation2 + $0xf8] sm:$0xff] %v1201
      // Predicated region
      $region37: #{_stem_forward.4} parent=31 // pred_check
        %p1234 = pneg %p268
      $region38: #{_stem_forward.4} parent=31 // pred_check_branch
        %1236 = sbr.rel (%p1234) target = $region40
      $region39: #{_stem_forward.4} parent=31 // pred_region
        %v1237 = vld [vmem:[#allocation2] sm:$0xff]
        %v1238 = vld [vmem:[#allocation2 + $0x8] sm:$0xff]
        %v1239 = vld [vmem:[#allocation2 + $0x10] sm:$0xff]
        %v1240 = vld [vmem:[#allocation2 + $0x18] sm:$0xff]
        %v1241 = vld [vmem:[#allocation2 + $0x20] sm:$0xff]
        %v1242 = vld [vmem:[#allocation2 + $0x28] sm:$0xff]
        %v1243 = vld [vmem:[#allocation2 + $0x30] sm:$0xff]
        %v1244 = vld [vmem:[#allocation2 + $0x38] sm:$0xff]
        %v1245 = vld [vmem:[#allocation2 + $0x40] sm:$0xff]
        %v1246 = vld [vmem:[#allocation2 + $0x48] sm:$0xff]
        %v1247 = vld [vmem:[#allocation2 + $0x50] sm:$0xff]
        %v1248 = vld [vmem:[#allocation2 + $0x58] sm:$0xff]
        %v1249 = vld [vmem:[#allocation2 + $0x60] sm:$0xff]
        %v1250 = vld [vmem:[#allocation2 + $0x68] sm:$0xff]
        %v1251 = vld [vmem:[#allocation2 + $0x70] sm:$0xff]
        %v1252 = vld [vmem:[#allocation2 + $0x78] sm:$0xff]
        %v1253 = vld [vmem:[#allocation2 + $0x80] sm:$0xff]
        %v1254 = vld [vmem:[#allocation2 + $0x88] sm:$0xff]
        %v1255 = vld [vmem:[#allocation2 + $0x90] sm:$0xff]
        %v1256 = vld [vmem:[#allocation2 + $0x98] sm:$0xff]
        %v1257 = vld [vmem:[#allocation2 + $0xa0] sm:$0xff]
        %v1258 = vld [vmem:[#allocation2 + $0xa8] sm:$0xff]
        %v1259 = vld [vmem:[#allocation2 + $0xb0] sm:$0xff]
        %v1260 = vld [vmem:[#allocation2 + $0xb8] sm:$0xff]
        %v1261 = vld [vmem:[#allocation2 + $0xc0] sm:$0xff]
        %v1262 = vld [vmem:[#allocation2 + $0xc8] sm:$0xff]
        %v1263 = vld [vmem:[#allocation2 + $0xd0] sm:$0xff]
        %v1264 = vld [vmem:[#allocation2 + $0xd8] sm:$0xff]
        %v1265 = vld [vmem:[#allocation2 + $0xe0] sm:$0xff]
        %v1266 = vld [vmem:[#allocation2 + $0xe8] sm:$0xff]
        %v1267 = vld [vmem:[#allocation2 + $0xf0] sm:$0xff]
        %v1268 = vld [vmem:[#allocation2 + $0xf8] sm:$0xff]
        %v1269 = vld [vmem:[%s257] sm:$0x1]
        %v1271 = vlaneseq
        %v1272 = vshrl.u32 %v1271, 7
        %v1273 = vsub.s32 0, %v1272
        %v1274 = vrot.slane %v1269, %v1273
        %v1276 = vadd.f32 %v1237, %v1274
        %v1277 = vadd.f32 %v1238, %v1274
        %v1278 = vadd.f32 %v1239, %v1274
        %v1279 = vadd.f32 %v1240, %v1274
        %v1280 = vadd.f32 %v1241, %v1274
        %v1281 = vadd.f32 %v1242, %v1274
        %v1282 = vadd.f32 %v1243, %v1274
        %v1283 = vadd.f32 %v1244, %v1274
        %v1284 = vadd.f32 %v1245, %v1274
        %v1285 = vadd.f32 %v1246, %v1274
        %v1286 = vadd.f32 %v1247, %v1274
        %v1287 = vadd.f32 %v1248, %v1274
        %v1288 = vadd.f32 %v1249, %v1274
        %v1289 = vadd.f32 %v1250, %v1274
        %v1290 = vadd.f32 %v1251, %v1274
        %v1291 = vadd.f32 %v1252, %v1274
        %v1292 = vadd.f32 %v1253, %v1274
        %v1293 = vadd.f32 %v1254, %v1274
        %v1294 = vadd.f32 %v1255, %v1274
        %v1295 = vadd.f32 %v1256, %v1274
        %v1296 = vadd.f32 %v1257, %v1274
        %v1297 = vadd.f32 %v1258, %v1274
        %v1298 = vadd.f32 %v1259, %v1274
        %v1299 = vadd.f32 %v1260, %v1274
        %v1300 = vadd.f32 %v1261, %v1274
        %v1301 = vadd.f32 %v1262, %v1274
        %v1302 = vadd.f32 %v1263, %v1274
        %v1303 = vadd.f32 %v1264, %v1274
        %v1304 = vadd.f32 %v1265, %v1274
        %v1305 = vadd.f32 %v1266, %v1274
        %v1306 = vadd.f32 %v1267, %v1274
        %v1307 = vadd.f32 %v1268, %v1274
        %v1308 = vmax.f32 %v1276, 0.0
        %v1309 = vmax.f32 %v1277, 0.0
        %v1310 = vmax.f32 %v1278, 0.0
        %v1311 = vmax.f32 %v1279, 0.0
        %v1312 = vmax.f32 %v1280, 0.0
        %v1313 = vmax.f32 %v1281, 0.0
        %v1314 = vmax.f32 %v1282, 0.0
        %v1315 = vmax.f32 %v1283, 0.0
        %v1316 = vmax.f32 %v1284, 0.0
        %v1317 = vmax.f32 %v1285, 0.0
        %v1318 = vmax.f32 %v1286, 0.0
        %v1319 = vmax.f32 %v1287, 0.0
        %v1320 = vmax.f32 %v1288, 0.0
        %v1321 = vmax.f32 %v1289, 0.0
        %v1322 = vmax.f32 %v1290, 0.0
        %v1323 = vmax.f32 %v1291, 0.0
        %v1324 = vmax.f32 %v1292, 0.0
        %v1325 = vmax.f32 %v1293, 0.0
        %v1326 = vmax.f32 %v1294, 0.0
        %v1327 = vmax.f32 %v1295, 0.0
        %v1328 = vmax.f32 %v1296, 0.0
        %v1329 = vmax.f32 %v1297, 0.0
        %v1330 = vmax.f32 %v1298, 0.0
        %v1331 = vmax.f32 %v1299, 0.0
        %v1332 = vmax.f32 %v1300, 0.0
        %v1333 = vmax.f32 %v1301, 0.0
        %v1334 = vmax.f32 %v1302, 0.0
        %v1335 = vmax.f32 %v1303, 0.0
        %v1336 = vmax.f32 %v1304, 0.0
        %v1337 = vmax.f32 %v1305, 0.0
        %v1338 = vmax.f32 %v1306, 0.0
        %v1339 = vmax.f32 %v1307, 0.0
        %v1340 = vpack.c.bf16 %v1309, %v1308
        %v1341 = vpack.c.bf16 %v1311, %v1310
        %v1342 = vpack.c.bf16 %v1313, %v1312
        %v1343 = vpack.c.bf16 %v1315, %v1314
        %v1344 = vpack.c.bf16 %v1317, %v1316
        %v1345 = vpack.c.bf16 %v1319, %v1318
        %v1346 = vpack.c.bf16 %v1321, %v1320
        %v1347 = vpack.c.bf16 %v1323, %v1322
        %v1348 = vpack.c.bf16 %v1325, %v1324
        %v1349 = vpack.c.bf16 %v1327, %v1326
        %v1350 = vpack.c.bf16 %v1329, %v1328
        %v1351 = vpack.c.bf16 %v1331, %v1330
        %v1352 = vpack.c.bf16 %v1333, %v1332
        %v1353 = vpack.c.bf16 %v1335, %v1334
        %v1354 = vpack.c.bf16 %v1337, %v1336
        %v1355 = vpack.c.bf16 %v1339, %v1338
        %v1372 = vunpack.c.l.b16 %v1340
        %v1373 = vunpack.c.h.b16 %v1340
        %v1374 = vunpack.c.l.b16 %v1341
        %v1375 = vunpack.c.h.b16 %v1341
        %v1376 = vunpack.c.l.b16 %v1342
        %v1377 = vunpack.c.h.b16 %v1342
        %v1378 = vunpack.c.l.b16 %v1343
        %v1379 = vunpack.c.h.b16 %v1343
        %v1380 = vunpack.c.l.b16 %v1344
        %v1381 = vunpack.c.h.b16 %v1344
        %v1382 = vunpack.c.l.b16 %v1345
        %v1383 = vunpack.c.h.b16 %v1345
        %v1384 = vunpack.c.l.b16 %v1346
        %v1385 = vunpack.c.h.b16 %v1346
        %v1386 = vunpack.c.l.b16 %v1347
        %v1387 = vunpack.c.h.b16 %v1347
        %v1388 = vunpack.c.l.b16 %v1348
        %v1389 = vunpack.c.h.b16 %v1348
        %v1390 = vunpack.c.l.b16 %v1349
        %v1391 = vunpack.c.h.b16 %v1349
        %v1392 = vunpack.c.l.b16 %v1350
        %v1393 = vunpack.c.h.b16 %v1350
        %v1394 = vunpack.c.l.b16 %v1351
        %v1395 = vunpack.c.h.b16 %v1351
        %v1396 = vunpack.c.l.b16 %v1352
        %v1397 = vunpack.c.h.b16 %v1352
        %v1398 = vunpack.c.l.b16 %v1353
        %v1399 = vunpack.c.h.b16 %v1353
        %v1400 = vunpack.c.l.b16 %v1354
        %v1401 = vunpack.c.h.b16 %v1354
        %v1402 = vunpack.c.l.b16 %v1355
        %v1403 = vunpack.c.h.b16 %v1355
        %v1404 = vpack.c.b16 %v1372, %v1372
        %v1405 = vpack.c.b16 %v1373, %v1373
        %v1406 = vpack.c.b16 %v1374, %v1374
        %v1407 = vpack.c.b16 %v1375, %v1375
        %v1408 = vpack.c.b16 %v1376, %v1376
        %v1409 = vpack.c.b16 %v1377, %v1377
        %v1410 = vpack.c.b16 %v1378, %v1378
        %v1411 = vpack.c.b16 %v1379, %v1379
        %v1412 = vpack.c.b16 %v1380, %v1380
        %v1413 = vpack.c.b16 %v1381, %v1381
        %v1414 = vpack.c.b16 %v1382, %v1382
        %v1415 = vpack.c.b16 %v1383, %v1383
        %v1416 = vpack.c.b16 %v1384, %v1384
        %v1417 = vpack.c.b16 %v1385, %v1385
        %v1418 = vpack.c.b16 %v1386, %v1386
        %v1419 = vpack.c.b16 %v1387, %v1387
        %v1420 = vpack.c.b16 %v1388, %v1388
        %v1421 = vpack.c.b16 %v1389, %v1389
        %v1422 = vpack.c.b16 %v1390, %v1390
        %v1423 = vpack.c.b16 %v1391, %v1391
        %v1424 = vpack.c.b16 %v1392, %v1392
        %v1425 = vpack.c.b16 %v1393, %v1393
        %v1426 = vpack.c.b16 %v1394, %v1394
        %v1427 = vpack.c.b16 %v1395, %v1395
        %v1428 = vpack.c.b16 %v1396, %v1396
        %v1429 = vpack.c.b16 %v1397, %v1397
        %v1430 = vpack.c.b16 %v1398, %v1398
        %v1431 = vpack.c.b16 %v1399, %v1399
        %v1432 = vpack.c.b16 %v1400, %v1400
        %v1433 = vpack.c.b16 %v1401, %v1401
        %v1434 = vpack.c.b16 %v1402, %v1402
        %v1435 = vpack.c.b16 %v1403, %v1403
        %1468 = vst [vmem:[%s265] sm:$0xf] %v1404
        %1469 = vst [vmem:[%s265 + $0x4] sm:$0xf] %v1405
        %1470 = vst [vmem:[%s265 + $0x8] sm:$0xf] %v1406
        %1471 = vst [vmem:[%s265 + $0xc] sm:$0xf] %v1407
        %1472 = vst [vmem:[%s265 + $0x10] sm:$0xf] %v1408
        %1473 = vst [vmem:[%s265 + $0x14] sm:$0xf] %v1409
        %1474 = vst [vmem:[%s265 + $0x18] sm:$0xf] %v1410
        %1475 = vst [vmem:[%s265 + $0x1c] sm:$0xf] %v1411
        %1476 = vst [vmem:[%s265 + $0x20] sm:$0xf] %v1412
        %1477 = vst [vmem:[%s265 + $0x24] sm:$0xf] %v1413
        %1478 = vst [vmem:[%s265 + $0x28] sm:$0xf] %v1414
        %1479 = vst [vmem:[%s265 + $0x2c] sm:$0xf] %v1415
        %1480 = vst [vmem:[%s265 + $0x30] sm:$0xf] %v1416
        %1481 = vst [vmem:[%s265 + $0x34] sm:$0xf] %v1417
        %1482 = vst [vmem:[%s265 + $0x38] sm:$0xf] %v1418
        %1483 = vst [vmem:[%s265 + $0x3c] sm:$0xf] %v1419
        %1484 = vst [vmem:[%s265 + $0x40] sm:$0xf] %v1420
        %1485 = vst [vmem:[%s265 + $0x44] sm:$0xf] %v1421
        %1486 = vst [vmem:[%s265 + $0x48] sm:$0xf] %v1422
        %1487 = vst [vmem:[%s265 + $0x4c] sm:$0xf] %v1423
        %1488 = vst [vmem:[%s265 + $0x50] sm:$0xf] %v1424
        %1489 = vst [vmem:[%s265 + $0x54] sm:$0xf] %v1425
        %1490 = vst [vmem:[%s265 + $0x58] sm:$0xf] %v1426
        %1491 = vst [vmem:[%s265 + $0x5c] sm:$0xf] %v1427
        %1492 = vst [vmem:[%s265 + $0x60] sm:$0xf] %v1428
        %1493 = vst [vmem:[%s265 + $0x64] sm:$0xf] %v1429
        %1494 = vst [vmem:[%s265 + $0x68] sm:$0xf] %v1430
        %1495 = vst [vmem:[%s265 + $0x6c] sm:$0xf] %v1431
        %1496 = vst [vmem:[%s265 + $0x70] sm:$0xf] %v1432
        %1497 = vst [vmem:[%s265 + $0x74] sm:$0xf] %v1433
        %1498 = vst [vmem:[%s265 + $0x78] sm:$0xf] %v1434
        %1499 = vst [vmem:[%s265 + $0x7c] sm:$0xf] %v1435
      $region40: #{_stem_forward.4} parent=31 // pred_fallthru
        _
      %s1500 = smul.u32 32, %s19
      %p1501 = scmp.lt.s32.totalorder %s1500, 127
      %s1502 = scalar_select %p1501, %s1500, 127
      %p1503 = scmp.lt.s32.totalorder %s20, 0
      %s1504 = scalar_select %p1503, %s20, 0
      %s1505 = sadd.s32 %s1504, %s1502
      %s1506 = smul.addr %s1505, 4
      %s1507 = scalar_lea.vmem %s3, %s1506
      // Predicated region
      $region41: #{_stem_forward.4} parent=31 // pred_check
        %p1508 = pneg %p135
      $region42: #{_stem_forward.4} parent=31 // pred_check_branch
        %1510 = sbr.rel (%p1508) target = $region44
      $region43: #{_stem_forward.4} parent=31 // pred_region
        %s1511 = smul.u32 32, %s19
      $region44: #{_stem_forward.4} parent=31 // pred_fallthru
        _
    $region32: #{_stem_forward.4} parent=5 // pred_fallthru
      _
    %p1512 = scmp.le.s32.totalorder 2, %s9
    // Predicated region
    $region45: #{_stem_forward.4} parent=5 // pred_check
      %p1513 = pneg %p1512
    $region46: #{_stem_forward.4} parent=5 // pred_check_branch
      %1515 = sbr.rel (%p1513) target = $region48
    $region47: #{_stem_forward.4} parent=5 // pred_region
      %s1516 = ssub.s32 %s9, 2
      // Predicated region
      $region49: #{_stem_forward.4} parent=47 // pred_check
        %p1517 = pneg %p141
      $region50: #{_stem_forward.4} parent=47 // pred_check_branch
        %1519 = sbr.rel (%p1517) target = $region52
      $region51: #{_stem_forward.4} parent=47 // pred_region
        %s1520 = smul.u32 32, %s22
        %p1521 = scmp.lt.s32.totalorder %s1520, 127
        %s1522 = scalar_select %p1521, %s1520, 127
        %p1523 = scmp.lt.s32.totalorder %s23, 0
        %s1524 = scalar_select %p1523, %s23, 0
        %s1525 = sadd.s32 %s1524, %s1522
        %s1526 = smul.addr %s1525, 4
        %s1527 = scalar_lea.vmem %s3, %s1526
      $region52: #{_stem_forward.4} parent=47 // pred_fallthru
        _
    $region48: #{_stem_forward.4} parent=5 // pred_fallthru
      _
  $region6: #{_stem_forward.4} parent=0 // loop_footer
    %s13 = sadd.s32 1, %s9
  $region7: #{_stem_forward.4} parent=0 // loop_footer_branch
    %8 = sbr.rel target = $region3
  $region8: #{_stem_forward.4} parent=0 // loop_exit
    _

</llo_original>
